<compile_context>
chip_gen: v5e
topology: v5e:2x2
jax: 0.10.0
libtpu: 0.0.40
codegen_flags: <defaults>
</compile_context>

<pallas_src>
import math

import jax
import jax.numpy as jnp
from jax.experimental import pallas as pl
from jax.experimental.pallas import tpu as pltpu

# ----------------------------- config (small, synthetic) -----------------------------
VOCAB = 50            # rows of the pretrained embedding table
VOCAB_PAD = 64        # padded to a multiple of 8 for a clean one-hot matmul
EMB_DIM = 32          # config['embeddings']['size']
D_MODEL = 32          # config['transformer_embedding_dim']
N_HEADS = 2           # config['attention_heads']
HEAD_DIM = D_MODEL // N_HEADS
FF_DIM = 64           # config['transformer_ff_dim']
N_LAYERS = 2          # config['num_of_transformer_layers']
N_CLASSES = 5         # len(config['class_mapping'])
C_PAD = 128           # lane-dense padded classifier width
MAX_LEN = 8           # config['max_len']
BATCH = 2
BS = BATCH * MAX_LEN          # batch collapsed onto sublanes (16)
BHS = BATCH * N_HEADS * MAX_LEN   # (batch, head, seq) stacked rows (32)

NEG_SLOPE = 0.01      # nn.LeakyReLU default
LN_EPS = 1e-5
LAYER_ROWS = 120      # rows per layer in the packed layer slab (multiple of 8)


# ----------------------------- in-kernel helpers -----------------------------
def _leaky_relu(x):
    return jnp.where(x > 0, x, NEG_SLOPE * x)


def _layer_norm(x, gamma, beta):
    mu = jnp.mean(x, axis=-1, keepdims=True)
    var = jnp.mean((x - mu) ** 2, axis=-1, keepdims=True)
    return (x - mu) * jax.lax.rsqrt(var + LN_EPS) * gamma + beta


def _softmax_last(s):
    s = s - jnp.max(s, axis=-1, keepdims=True)
    p = jnp.exp(s)
    return p * pl.reciprocal(jnp.sum(p, axis=-1, keepdims=True), approx=True)


# ----------------------------- fused kernel -----------------------------
def fused_ner_kernel(ids_ref, const_ref, front_ref, layers_ref, cls_ref, out_ref):
    f32 = jnp.float32

    # --- unpack precomputed constants (static slices of one slab) ---
    P     = const_ref[0:BHS, 0:BS]            # (32,16) expand (B*S) rows -> (B*H*S) rows
    hmask = const_ref[0:BHS, 16:48]           # (32,32) lane-select of own head
    amask = const_ref[0:BHS, 48:80]           # (32,32) block-diag + key-padding additive mask
    R     = const_ref[0:BS, 80:112]           # (16,32) reduce (B*H*S) rows -> (B*S) rows (= P^T)
    pos   = const_ref[BS:2 * BS, 80:112]      # (16,32) sinusoidal PE tiled over batch

    # --- embedding lookup as one-hot matmul (table fully resident in VMEM) ---
    ids = ids_ref[...]                                               # (BS, 1) int32
    iota = jax.lax.broadcasted_iota(jnp.int32, (BS, VOCAB_PAD), 1)
    onehot = (iota == ids).astype(f32)                               # (BS, VOCAB_PAD)
    table = front_ref[0:VOCAB_PAD, 0:EMB_DIM]
    x = jnp.dot(onehot, table, preferred_element_type=f32)           # (BS, EMB_DIM)

    # --- entry mapping -> leaky_relu -> ResidualBlock -> leaky_relu -> + PE ---
    w_in = front_ref[0:EMB_DIM, 32:64]
    rw1  = front_ref[0:D_MODEL, 64:96]
    rw2  = front_ref[0:D_MODEL, 96:128]
    b_in = front_ref[32:33, 32:64]
    rb1  = front_ref[32:33, 64:96]
    rb2  = front_ref[32:33, 96:128]

    x = _leaky_relu(jnp.dot(x, w_in, preferred_element_type=f32) + b_in)   # (BS, D)
    h = _leaky_relu(jnp.dot(x, rw1, preferred_element_type=f32) + rb1)
    h = jnp.dot(h, rw2, preferred_element_type=f32) + rb2
    x = _leaky_relu(x + h)                                                 # residual + act
    x = x + pos                                                            # positional encodings

    # --- transformer encoder layers (post-norm, ReLU FFN), unrolled ---
    for l in range(N_LAYERS):
        base = l * LAYER_ROWS
        wqkv = layers_ref[base:base + D_MODEL, 0:3 * D_MODEL]          # (32,96)  q cols pre-scaled
        wo   = layers_ref[base:base + D_MODEL, 96:128]                 # (32,32)
        wf2  = layers_ref[base + 32:base + 32 + FF_DIM, 0:D_MODEL]     # (64,32)
        wf1  = layers_ref[base + 32:base + 64, 32:32 + FF_DIM]         # (32,64)
        b_qkv = layers_ref[base + 96:base + 97, 0:3 * D_MODEL]         # (1,96)
        bo    = layers_ref[base + 96:base + 97, 96:128]                # (1,32)
        bf1   = layers_ref[base + 104:base + 105, 0:64]
        bf2   = layers_ref[base + 104:base + 105, 64:96]
        g1    = layers_ref[base + 104:base + 105, 96:128]
        be1   = layers_ref[base + 112:base + 113, 0:32]
        g2    = layers_ref[base + 112:base + 113, 32:64]
        be2   = layers_ref[base + 112:base + 113, 64:96]

        # expand rows to (b, h, s) layout, then one fused QKV matmul
        x_big = jnp.dot(P, x, preferred_element_type=f32)              # (BHS, D)
        qkv = jnp.dot(x_big, wqkv, preferred_element_type=f32) + b_qkv  # (BHS, 3D)
        q_m = qkv[:, 0:D_MODEL] * hmask          # own-head lanes only (scale already folded in)
        k_b = qkv[:, D_MODEL:2 * D_MODEL]
        v_b = qkv[:, 2 * D_MODEL:3 * D_MODEL]

        # single block-diagonal score matmul + single softmax
        s = jnp.dot(q_m, k_b.T, preferred_element_type=f32) + amask    # (BHS, BHS)
        p = _softmax_last(s)                                            # off-block probs == 0

        # single AV matmul, mask to own head lanes, fold heads back to (BS, D)
        av = jnp.dot(p, v_b, preferred_element_type=f32) * hmask        # (BHS, D)
        attn = jnp.dot(R, av, preferred_element_type=f32)               # (BS, D) heads concat
        attn = jnp.dot(attn, wo, preferred_element_type=f32) + bo

        x = _layer_norm(x + attn, g1, be1)

        f = jnp.maximum(jnp.dot(x, wf1, preferred_element_type=f32) + bf1, 0.0)
        f = jnp.dot(f, wf2, preferred_element_type=f32) + bf2

        x = _layer_norm(x + f, g2, be2)

    # --- classifier: lane-dense (BS, 128) store, sliced to N_CLASSES in JAX ---
    w_c = cls_ref[0:D_MODEL, :]
    b_c = cls_ref[32:33, :]
    out_ref[...] = jnp.dot(x, w_c, preferred_element_type=f32) + b_c


# ----------------------------- wrapper -----------------------------
def ner_classifier_forward(token_ids, padding_mask, params):
    """token_ids: int32 [B, S]; padding_mask: bool [B, S] (True = PAD)."""
    B, S = token_ids.shape
    ids_flat = token_ids.reshape(B * S, 1).astype(jnp.int32)

    # build the (BHS, BHS) additive mask: cross-batch/cross-head blocks and
    # padded keys get -1e9; insert it into the static constant slab.
    r = jnp.arange(BHS)
    b_of = r // (N_HEADS * MAX_LEN)
    h_of = (r // MAX_LEN) % N_HEADS
    s_of = r % MAX_LEN
    same_block = (b_of[:, None] == b_of[None, :]) & (h_of[:, None] == h_of[None, :])
    key_pad = padding_mask[b_of, s_of]                                  # (BHS,)
    valid = same_block & (~key_pad)[None, :]
    amask = jnp.where(valid, 0.0, -1e9).astype(jnp.float32)
    cslab = params["const_base"].at[:, 48:80].set(amask)

    args = [ids_flat, cslab, params["front"], params["layers"], params["cls"]]
    vmem = pl.BlockSpec(memory_space=pltpu.MemorySpace.VMEM)
    out_pad = pl.pallas_call(
        fused_ner_kernel,
        out_shape=jax.ShapeDtypeStruct((B * S, C_PAD), jnp.float32),
        in_specs=[vmem] * len(args),
        out_specs=vmem,
    )(*args)
    return out_pad.reshape(B, S, C_PAD)[:, :, :N_CLASSES]


# ----------------------------- parameters -----------------------------
def sinusoidal_pos_enc(max_len, d_model):
    pos = jnp.arange(max_len, dtype=jnp.float32)[:, None]
    i = jnp.arange(0, d_model, 2, dtype=jnp.float32)[None, :]
    div = jnp.exp(-math.log(10000.0) * i / d_model)
    pe = jnp.zeros((max_len, d_model), dtype=jnp.float32)
    pe = pe.at[:, 0::2].set(jnp.sin(pos * div))
    pe = pe.at[:, 1::2].set(jnp.cos(pos * div))
    return pe


def init_params(key):
    ctr = [0]

    def nrm(shape, scale=0.05):
        ctr[0] += 1
        return scale * jax.random.normal(jax.random.fold_in(key, ctr[0]),
                                         shape, dtype=jnp.float32)

    # ---- constant slab: P (expand), head mask, [mask slot], R (reduce), PE ----
    r = jnp.arange(BHS)
    b_of = r // (N_HEADS * MAX_LEN)
    h_of = (r // MAX_LEN) % N_HEADS
    s_of = r % MAX_LEN
    rowmap = b_of * MAX_LEN + s_of
    P = (rowmap[:, None] == jnp.arange(BS)[None, :]).astype(jnp.float32)        # (BHS, BS)
    hmask = (jnp.arange(D_MODEL)[None, :] // HEAD_DIM == h_of[:, None]).astype(jnp.float32)
    pos_tiled = jnp.tile(sinusoidal_pos_enc(MAX_LEN, D_MODEL), (BATCH, 1))      # (BS, D)
    const_base = jnp.zeros((BHS, 128), jnp.float32)
    const_base = const_base.at[:, 0:BS].set(P)
    const_base = const_base.at[:, 16:48].set(hmask)
    const_base = const_base.at[0:BS, 80:112].set(P.T)
    const_base = const_base.at[BS:2 * BS, 80:112].set(pos_tiled)

    # ---- front slab: embedding table + entry mapping + residual block ----
    embedding = nrm((VOCAB, EMB_DIM), 1.0)                  # frozen pretrained table
    front = jnp.zeros((64, 128), jnp.float32)
    front = front.at[:VOCAB, 0:EMB_DIM].set(embedding)
    front = front.at[0:EMB_DIM, 32:64].set(nrm((EMB_DIM, D_MODEL)))   # w_entry
    front = front.at[0:D_MODEL, 64:96].set(nrm((D_MODEL, D_MODEL)))   # res_w1
    front = front.at[0:D_MODEL, 96:128].set(nrm((D_MODEL, D_MODEL)))  # res_w2
    front = front.at[32, 32:64].set(nrm((D_MODEL,)))                  # b_entry
    front = front.at[32, 64:96].set(nrm((D_MODEL,)))                  # res_b1
    front = front.at[32, 96:128].set(nrm((D_MODEL,)))                 # res_b2

    # ---- per-layer packed slabs ----
    scale = 1.0 / math.sqrt(HEAD_DIM)
    layer_slabs = []
    for _ in range(N_LAYERS):
        wq, wk, wv = nrm((D_MODEL, D_MODEL)), nrm((D_MODEL, D_MODEL)), nrm((D_MODEL, D_MODEL))
        bq, bk, bv = nrm((D_MODEL,)), nrm((D_MODEL,)), nrm((D_MODEL,))
        wqkv = jnp.concatenate([wq * scale, wk, wv], axis=1)          # 1/sqrt(Dh) folded into Q
        bqkv = jnp.concatenate([bq * scale, bk, bv], axis=0)
        L = jnp.zeros((LAYER_ROWS, 128), jnp.float32)
        L = L.at[0:D_MODEL, 0:3 * D_MODEL].set(wqkv)
        L = L.at[0:D_MODEL, 96:128].set(nrm((D_MODEL, D_MODEL)))      # wo
        L = L.at[32:32 + FF_DIM, 0:D_MODEL].set(nrm((FF_DIM, D_MODEL)))   # wf2
        L = L.at[32:64, 32:32 + FF_DIM].set(nrm((D_MODEL, FF_DIM)))       # wf1
        L = L.at[96, 0:3 * D_MODEL].set(bqkv)
        L = L.at[96, 96:128].set(nrm((D_MODEL,)))                     # bo
        L = L.at[104, 0:64].set(nrm((FF_DIM,)))                       # bf1
        L = L.at[104, 64:96].set(nrm((D_MODEL,)))                     # bf2
        L = L.at[104, 96:128].set(jnp.ones((D_MODEL,), jnp.float32))  # ln1 gamma
        L = L.at[112, 0:32].set(jnp.zeros((D_MODEL,), jnp.float32))   # ln1 beta
        L = L.at[112, 32:64].set(jnp.ones((D_MODEL,), jnp.float32))   # ln2 gamma
        L = L.at[112, 64:96].set(jnp.zeros((D_MODEL,), jnp.float32))  # ln2 beta
        layer_slabs.append(L)
    layers = jnp.concatenate(layer_slabs, axis=0)                     # (N_LAYERS*120, 128)

    # ---- classifier slab (lane-dense padded to 128 classes) ----
    cls = jnp.zeros((40, 128), jnp.float32)
    cls = cls.at[0:D_MODEL, 0:N_CLASSES].set(nrm((D_MODEL, N_CLASSES)))
    cls = cls.at[32, 0:N_CLASSES].set(nrm((N_CLASSES,)))

    return {"const_base": const_base, "front": front, "layers": layers, "cls": cls}


# ----------------------------- main -----------------------------
if __name__ == "__main__":
    key = jax.random.PRNGKey(0)
    params = init_params(key)

    token_ids = jax.random.randint(jax.random.fold_in(key, 1000),
                                   (BATCH, MAX_LEN), 0, VOCAB, dtype=jnp.int32)
    # last two positions of batch 0 are padding
    padding_mask = jnp.zeros((BATCH, MAX_LEN), dtype=bool).at[0, -2:].set(True)

    forward = jax.jit(ner_classifier_forward)
    y_pred = forward(token_ids, padding_mask, params)
    y_pred = jax.block_until_ready(y_pred)
    assert y_pred.shape == (BATCH, MAX_LEN, N_CLASSES)
    assert bool(jnp.all(jnp.isfinite(y_pred)))
    print("KERNEL_OK")
</pallas_src>

<mosaic_0001>
module attributes {stable_mosaic.version = 11 : i64} {
  func.func @fused_ner_kernel(%arg0: memref<16x1xi32, #tpu.memory_space<vmem>>, %arg1: memref<32x128xf32, #tpu.memory_space<vmem>>, %arg2: memref<64x128xf32, #tpu.memory_space<vmem>>, %arg3: memref<240x128xf32, #tpu.memory_space<vmem>>, %arg4: memref<40x128xf32, #tpu.memory_space<vmem>>, %arg5: memref<16x128xf32, #tpu.memory_space<vmem>>) attributes {dimension_semantics = [], scalar_prefetch = 0 : i64, scratch_operands = 0 : i64, tpu.core_type = #tpu.core_type<tc>} {
    %c0 = arith.constant 0 : index
    %c0_0 = arith.constant 0 : index
    %0 = vector.load %arg1[%c0, %c0_0] : memref<32x128xf32, #tpu.memory_space<vmem>>, vector<32x16xf32>
    %c0_1 = arith.constant 0 : index
    %c16 = arith.constant 16 : index
    %1 = vector.load %arg1[%c0_1, %c16] : memref<32x128xf32, #tpu.memory_space<vmem>>, vector<32x32xf32>
    %c0_2 = arith.constant 0 : index
    %c48 = arith.constant 48 : index
    %2 = vector.load %arg1[%c0_2, %c48] : memref<32x128xf32, #tpu.memory_space<vmem>>, vector<32x32xf32>
    %c0_3 = arith.constant 0 : index
    %c80 = arith.constant 80 : index
    %3 = vector.load %arg1[%c0_3, %c80] : memref<32x128xf32, #tpu.memory_space<vmem>>, vector<16x32xf32>
    %c16_4 = arith.constant 16 : index
    %c80_5 = arith.constant 80 : index
    %4 = vector.load %arg1[%c16_4, %c80_5] : memref<32x128xf32, #tpu.memory_space<vmem>>, vector<16x32xf32>
    %c0_6 = arith.constant 0 : index
    %c0_7 = arith.constant 0 : index
    %5 = vector.load %arg0[%c0_6, %c0_7] : memref<16x1xi32, #tpu.memory_space<vmem>>, vector<16x1xi32>
    %6 = tpu.iota {dimensions = array<i32: 1>} : vector<16x64xi32>
    %7 = vector.broadcast %5 : vector<16x1xi32> to vector<16x64xi32>
    %8 = arith.cmpi eq, %6, %7 : vector<16x64xi32>
    %9 = arith.extui %8 : vector<16x64xi1> to vector<16x64xi32>
    %10 = arith.sitofp %9 : vector<16x64xi32> to vector<16x64xf32>
    %c0_8 = arith.constant 0 : index
    %c0_9 = arith.constant 0 : index
    %11 = vector.load %arg2[%c0_8, %c0_9] : memref<64x128xf32, #tpu.memory_space<vmem>>, vector<64x32xf32>
    %cst = arith.constant dense<0.000000e+00> : vector<16x32xf32>
    %12 = tpu.matmul %10, %11, %cst {dimension_numbers = #tpu.dot_dimension_numbers<[1], [0], [0], [1], [0, 0, 1, 1], [], []>} : vector<16x64xf32>, vector<64x32xf32>, vector<16x32xf32> -> vector<16x32xf32>
    %c0_10 = arith.constant 0 : index
    %c32 = arith.constant 32 : index
    %13 = vector.load %arg2[%c0_10, %c32] : memref<64x128xf32, #tpu.memory_space<vmem>>, vector<32x32xf32>
    %c0_11 = arith.constant 0 : index
    %c64 = arith.constant 64 : index
    %14 = vector.load %arg2[%c0_11, %c64] : memref<64x128xf32, #tpu.memory_space<vmem>>, vector<32x32xf32>
    %c0_12 = arith.constant 0 : index
    %c96 = arith.constant 96 : index
    %15 = vector.load %arg2[%c0_12, %c96] : memref<64x128xf32, #tpu.memory_space<vmem>>, vector<32x32xf32>
    %c32_13 = arith.constant 32 : index
    %c32_14 = arith.constant 32 : index
    %16 = vector.load %arg2[%c32_13, %c32_14] : memref<64x128xf32, #tpu.memory_space<vmem>>, vector<1x32xf32>
    %c32_15 = arith.constant 32 : index
    %c64_16 = arith.constant 64 : index
    %17 = vector.load %arg2[%c32_15, %c64_16] : memref<64x128xf32, #tpu.memory_space<vmem>>, vector<1x32xf32>
    %c32_17 = arith.constant 32 : index
    %c96_18 = arith.constant 96 : index
    %18 = vector.load %arg2[%c32_17, %c96_18] : memref<64x128xf32, #tpu.memory_space<vmem>>, vector<1x32xf32>
    %cst_19 = arith.constant dense<0.000000e+00> : vector<16x32xf32>
    %19 = tpu.matmul %12, %13, %cst_19 {dimension_numbers = #tpu.dot_dimension_numbers<[1], [0], [0], [1], [0, 0, 1, 1], [], []>} : vector<16x32xf32>, vector<32x32xf32>, vector<16x32xf32> -> vector<16x32xf32>
    %20 = vector.broadcast %16 : vector<1x32xf32> to vector<16x32xf32>
    %21 = arith.addf %19, %20 : vector<16x32xf32>
    %cst_20 = arith.constant 0.000000e+00 : f32
    %22 = vector.broadcast %cst_20 : f32 to vector<16x32xf32>
    %23 = arith.cmpf ogt, %21, %22 : vector<16x32xf32>
    %cst_21 = arith.constant 0.00999999977 : f32
    %24 = vector.broadcast %cst_21 : f32 to vector<16x32xf32>
    %25 = arith.mulf %24, %21 : vector<16x32xf32>
    %26 = arith.select %23, %21, %25 : vector<16x32xi1>, vector<16x32xf32>
    %cst_22 = arith.constant dense<0.000000e+00> : vector<16x32xf32>
    %27 = tpu.matmul %26, %14, %cst_22 {dimension_numbers = #tpu.dot_dimension_numbers<[1], [0], [0], [1], [0, 0, 1, 1], [], []>} : vector<16x32xf32>, vector<32x32xf32>, vector<16x32xf32> -> vector<16x32xf32>
    %28 = vector.broadcast %17 : vector<1x32xf32> to vector<16x32xf32>
    %29 = arith.addf %27, %28 : vector<16x32xf32>
    %cst_23 = arith.constant 0.000000e+00 : f32
    %30 = vector.broadcast %cst_23 : f32 to vector<16x32xf32>
    %31 = arith.cmpf ogt, %29, %30 : vector<16x32xf32>
    %cst_24 = arith.constant 0.00999999977 : f32
    %32 = vector.broadcast %cst_24 : f32 to vector<16x32xf32>
    %33 = arith.mulf %32, %29 : vector<16x32xf32>
    %34 = arith.select %31, %29, %33 : vector<16x32xi1>, vector<16x32xf32>
    %cst_25 = arith.constant dense<0.000000e+00> : vector<16x32xf32>
    %35 = tpu.matmul %34, %15, %cst_25 {dimension_numbers = #tpu.dot_dimension_numbers<[1], [0], [0], [1], [0, 0, 1, 1], [], []>} : vector<16x32xf32>, vector<32x32xf32>, vector<16x32xf32> -> vector<16x32xf32>
    %36 = vector.broadcast %18 : vector<1x32xf32> to vector<16x32xf32>
    %37 = arith.addf %35, %36 : vector<16x32xf32>
    %38 = arith.addf %26, %37 : vector<16x32xf32>
    %cst_26 = arith.constant 0.000000e+00 : f32
    %39 = vector.broadcast %cst_26 : f32 to vector<16x32xf32>
    %40 = arith.cmpf ogt, %38, %39 : vector<16x32xf32>
    %cst_27 = arith.constant 0.00999999977 : f32
    %41 = vector.broadcast %cst_27 : f32 to vector<16x32xf32>
    %42 = arith.mulf %41, %38 : vector<16x32xf32>
    %43 = arith.select %40, %38, %42 : vector<16x32xi1>, vector<16x32xf32>
    %44 = arith.addf %43, %4 : vector<16x32xf32>
    %c0_28 = arith.constant 0 : index
    %c0_29 = arith.constant 0 : index
    %45 = vector.load %arg3[%c0_28, %c0_29] : memref<240x128xf32, #tpu.memory_space<vmem>>, vector<32x96xf32>
    %c0_30 = arith.constant 0 : index
    %c96_31 = arith.constant 96 : index
    %46 = vector.load %arg3[%c0_30, %c96_31] : memref<240x128xf32, #tpu.memory_space<vmem>>, vector<32x32xf32>
    %c32_32 = arith.constant 32 : index
    %c0_33 = arith.constant 0 : index
    %47 = vector.load %arg3[%c32_32, %c0_33] : memref<240x128xf32, #tpu.memory_space<vmem>>, vector<64x32xf32>
    %c32_34 = arith.constant 32 : index
    %c32_35 = arith.constant 32 : index
    %48 = vector.load %arg3[%c32_34, %c32_35] : memref<240x128xf32, #tpu.memory_space<vmem>>, vector<32x64xf32>
    %c96_36 = arith.constant 96 : index
    %c0_37 = arith.constant 0 : index
    %49 = vector.load %arg3[%c96_36, %c0_37] : memref<240x128xf32, #tpu.memory_space<vmem>>, vector<1x96xf32>
    %c96_38 = arith.constant 96 : index
    %c96_39 = arith.constant 96 : index
    %50 = vector.load %arg3[%c96_38, %c96_39] : memref<240x128xf32, #tpu.memory_space<vmem>>, vector<1x32xf32>
    %c104 = arith.constant 104 : index
    %c0_40 = arith.constant 0 : index
    %51 = vector.load %arg3[%c104, %c0_40] : memref<240x128xf32, #tpu.memory_space<vmem>>, vector<1x64xf32>
    %c104_41 = arith.constant 104 : index
    %c64_42 = arith.constant 64 : index
    %52 = vector.load %arg3[%c104_41, %c64_42] : memref<240x128xf32, #tpu.memory_space<vmem>>, vector<1x32xf32>
    %c104_43 = arith.constant 104 : index
    %c96_44 = arith.constant 96 : index
    %53 = vector.load %arg3[%c104_43, %c96_44] : memref<240x128xf32, #tpu.memory_space<vmem>>, vector<1x32xf32>
    %c112 = arith.constant 112 : index
    %c0_45 = arith.constant 0 : index
    %54 = vector.load %arg3[%c112, %c0_45] : memref<240x128xf32, #tpu.memory_space<vmem>>, vector<1x32xf32>
    %c112_46 = arith.constant 112 : index
    %c32_47 = arith.constant 32 : index
    %55 = vector.load %arg3[%c112_46, %c32_47] : memref<240x128xf32, #tpu.memory_space<vmem>>, vector<1x32xf32>
    %c112_48 = arith.constant 112 : index
    %c64_49 = arith.constant 64 : index
    %56 = vector.load %arg3[%c112_48, %c64_49] : memref<240x128xf32, #tpu.memory_space<vmem>>, vector<1x32xf32>
    %cst_50 = arith.constant dense<0.000000e+00> : vector<32x32xf32>
    %57 = tpu.matmul %0, %44, %cst_50 {dimension_numbers = #tpu.dot_dimension_numbers<[1], [0], [0], [1], [0, 0, 1, 1], [], []>} : vector<32x16xf32>, vector<16x32xf32>, vector<32x32xf32> -> vector<32x32xf32>
    %cst_51 = arith.constant dense<0.000000e+00> : vector<32x96xf32>
    %58 = tpu.matmul %57, %45, %cst_51 {dimension_numbers = #tpu.dot_dimension_numbers<[1], [0], [0], [1], [0, 0, 1, 1], [], []>} : vector<32x32xf32>, vector<32x96xf32>, vector<32x96xf32> -> vector<32x96xf32>
    %59 = vector.broadcast %49 : vector<1x96xf32> to vector<32x96xf32>
    %60 = arith.addf %58, %59 : vector<32x96xf32>
    %61 = vector.extract_strided_slice %60 {offsets = [0, 0], sizes = [32, 32], strides = [1, 1]} : vector<32x96xf32> to vector<32x32xf32>
    %62 = arith.mulf %61, %1 : vector<32x32xf32>
    %63 = vector.extract_strided_slice %60 {offsets = [0, 32], sizes = [32, 32], strides = [1, 1]} : vector<32x96xf32> to vector<32x32xf32>
    %64 = vector.extract_strided_slice %60 {offsets = [0, 64], sizes = [32, 32], strides = [1, 1]} : vector<32x96xf32> to vector<32x32xf32>
    %65 = tpu.transpose %63, [1, 0] : vector<32x32xf32> -> vector<32x32xf32>
    %cst_52 = arith.constant dense<0.000000e+00> : vector<32x32xf32>
    %66 = tpu.matmul %62, %65, %cst_52 {dimension_numbers = #tpu.dot_dimension_numbers<[1], [0], [0], [1], [0, 0, 1, 1], [], []>} : vector<32x32xf32>, vector<32x32xf32>, vector<32x32xf32> -> vector<32x32xf32>
    %67 = arith.addf %66, %2 : vector<32x32xf32>
    %cst_53 = arith.constant dense<0xFF800000> : vector<32xf32>
    %68 = vector.multi_reduction <maximumf>, %67, %cst_53 [1] : vector<32x32xf32> to vector<32xf32>
    %69 = vector.shape_cast %68 : vector<32xf32> to vector<32x1xf32>
    %70 = vector.broadcast %69 : vector<32x1xf32> to vector<32x32xf32>
    %71 = arith.subf %67, %70 : vector<32x32xf32>
    %72 = math.exp %71 : vector<32x32xf32>
    %cst_54 = arith.constant dense<0.000000e+00> : vector<32xf32>
    %73 = vector.multi_reduction <add>, %72, %cst_54 [1] : vector<32x32xf32> to vector<32xf32>
    %74 = vector.shape_cast %73 : vector<32xf32> to vector<32x1xf32>
    %75 = tpu.reciprocal %74 {approx = true} : vector<32x1xf32> -> vector<32x1xf32>
    %76 = vector.broadcast %75 : vector<32x1xf32> to vector<32x32xf32>
    %77 = arith.mulf %72, %76 : vector<32x32xf32>
    %cst_55 = arith.constant dense<0.000000e+00> : vector<32x32xf32>
    %78 = tpu.matmul %77, %64, %cst_55 {dimension_numbers = #tpu.dot_dimension_numbers<[1], [0], [0], [1], [0, 0, 1, 1], [], []>} : vector<32x32xf32>, vector<32x32xf32>, vector<32x32xf32> -> vector<32x32xf32>
    %79 = arith.mulf %78, %1 : vector<32x32xf32>
    %cst_56 = arith.constant dense<0.000000e+00> : vector<16x32xf32>
    %80 = tpu.matmul %3, %79, %cst_56 {dimension_numbers = #tpu.dot_dimension_numbers<[1], [0], [0], [1], [0, 0, 1, 1], [], []>} : vector<16x32xf32>, vector<32x32xf32>, vector<16x32xf32> -> vector<16x32xf32>
    %cst_57 = arith.constant dense<0.000000e+00> : vector<16x32xf32>
    %81 = tpu.matmul %80, %46, %cst_57 {dimension_numbers = #tpu.dot_dimension_numbers<[1], [0], [0], [1], [0, 0, 1, 1], [], []>} : vector<16x32xf32>, vector<32x32xf32>, vector<16x32xf32> -> vector<16x32xf32>
    %82 = vector.broadcast %50 : vector<1x32xf32> to vector<16x32xf32>
    %83 = arith.addf %81, %82 : vector<16x32xf32>
    %84 = arith.addf %44, %83 : vector<16x32xf32>
    %cst_58 = arith.constant dense<0.000000e+00> : vector<16xf32>
    %85 = vector.multi_reduction <add>, %84, %cst_58 [1] : vector<16x32xf32> to vector<16xf32>
    %86 = vector.shape_cast %85 : vector<16xf32> to vector<16x1xf32>
    %cst_59 = arith.constant 3.200000e+01 : f32
    %87 = vector.broadcast %cst_59 : f32 to vector<16x1xf32>
    %88 = arith.divf %86, %87 : vector<16x1xf32>
    %89 = vector.broadcast %88 : vector<16x1xf32> to vector<16x32xf32>
    %90 = arith.subf %84, %89 : vector<16x32xf32>
    %91 = arith.mulf %90, %90 : vector<16x32xf32>
    %cst_60 = arith.constant dense<0.000000e+00> : vector<16xf32>
    %92 = vector.multi_reduction <add>, %91, %cst_60 [1] : vector<16x32xf32> to vector<16xf32>
    %93 = vector.shape_cast %92 : vector<16xf32> to vector<16x1xf32>
    %cst_61 = arith.constant 3.200000e+01 : f32
    %94 = vector.broadcast %cst_61 : f32 to vector<16x1xf32>
    %95 = arith.divf %93, %94 : vector<16x1xf32>
    %96 = vector.broadcast %88 : vector<16x1xf32> to vector<16x32xf32>
    %97 = arith.subf %84, %96 : vector<16x32xf32>
    %cst_62 = arith.constant 9.99999974E-6 : f32
    %98 = vector.broadcast %cst_62 : f32 to vector<16x1xf32>
    %99 = arith.addf %95, %98 : vector<16x1xf32>
    %100 = math.rsqrt %99 : vector<16x1xf32>
    %101 = vector.broadcast %100 : vector<16x1xf32> to vector<16x32xf32>
    %102 = arith.mulf %97, %101 : vector<16x32xf32>
    %103 = vector.broadcast %53 : vector<1x32xf32> to vector<16x32xf32>
    %104 = arith.mulf %102, %103 : vector<16x32xf32>
    %105 = vector.broadcast %54 : vector<1x32xf32> to vector<16x32xf32>
    %106 = arith.addf %104, %105 : vector<16x32xf32>
    %cst_63 = arith.constant dense<0.000000e+00> : vector<16x64xf32>
    %107 = tpu.matmul %106, %48, %cst_63 {dimension_numbers = #tpu.dot_dimension_numbers<[1], [0], [0], [1], [0, 0, 1, 1], [], []>} : vector<16x32xf32>, vector<32x64xf32>, vector<16x64xf32> -> vector<16x64xf32>
    %108 = vector.broadcast %51 : vector<1x64xf32> to vector<16x64xf32>
    %109 = arith.addf %107, %108 : vector<16x64xf32>
    %cst_64 = arith.constant 0.000000e+00 : f32
    %110 = vector.broadcast %cst_64 : f32 to vector<16x64xf32>
    %111 = arith.maximumf %109, %110 : vector<16x64xf32>
    %cst_65 = arith.constant dense<0.000000e+00> : vector<16x32xf32>
    %112 = tpu.matmul %111, %47, %cst_65 {dimension_numbers = #tpu.dot_dimension_numbers<[1], [0], [0], [1], [0, 0, 1, 1], [], []>} : vector<16x64xf32>, vector<64x32xf32>, vector<16x32xf32> -> vector<16x32xf32>
    %113 = vector.broadcast %52 : vector<1x32xf32> to vector<16x32xf32>
    %114 = arith.addf %112, %113 : vector<16x32xf32>
    %115 = arith.addf %106, %114 : vector<16x32xf32>
    %cst_66 = arith.constant dense<0.000000e+00> : vector<16xf32>
    %116 = vector.multi_reduction <add>, %115, %cst_66 [1] : vector<16x32xf32> to vector<16xf32>
    %117 = vector.shape_cast %116 : vector<16xf32> to vector<16x1xf32>
    %cst_67 = arith.constant 3.200000e+01 : f32
    %118 = vector.broadcast %cst_67 : f32 to vector<16x1xf32>
    %119 = arith.divf %117, %118 : vector<16x1xf32>
    %120 = vector.broadcast %119 : vector<16x1xf32> to vector<16x32xf32>
    %121 = arith.subf %115, %120 : vector<16x32xf32>
    %122 = arith.mulf %121, %121 : vector<16x32xf32>
    %cst_68 = arith.constant dense<0.000000e+00> : vector<16xf32>
    %123 = vector.multi_reduction <add>, %122, %cst_68 [1] : vector<16x32xf32> to vector<16xf32>
    %124 = vector.shape_cast %123 : vector<16xf32> to vector<16x1xf32>
    %cst_69 = arith.constant 3.200000e+01 : f32
    %125 = vector.broadcast %cst_69 : f32 to vector<16x1xf32>
    %126 = arith.divf %124, %125 : vector<16x1xf32>
    %127 = vector.broadcast %119 : vector<16x1xf32> to vector<16x32xf32>
    %128 = arith.subf %115, %127 : vector<16x32xf32>
    %cst_70 = arith.constant 9.99999974E-6 : f32
    %129 = vector.broadcast %cst_70 : f32 to vector<16x1xf32>
    %130 = arith.addf %126, %129 : vector<16x1xf32>
    %131 = math.rsqrt %130 : vector<16x1xf32>
    %132 = vector.broadcast %131 : vector<16x1xf32> to vector<16x32xf32>
    %133 = arith.mulf %128, %132 : vector<16x32xf32>
    %134 = vector.broadcast %55 : vector<1x32xf32> to vector<16x32xf32>
    %135 = arith.mulf %133, %134 : vector<16x32xf32>
    %136 = vector.broadcast %56 : vector<1x32xf32> to vector<16x32xf32>
    %137 = arith.addf %135, %136 : vector<16x32xf32>
    %c120 = arith.constant 120 : index
    %c0_71 = arith.constant 0 : index
    %138 = vector.load %arg3[%c120, %c0_71] : memref<240x128xf32, #tpu.memory_space<vmem>>, vector<32x96xf32>
    %c120_72 = arith.constant 120 : index
    %c96_73 = arith.constant 96 : index
    %139 = vector.load %arg3[%c120_72, %c96_73] : memref<240x128xf32, #tpu.memory_space<vmem>>, vector<32x32xf32>
    %c152 = arith.constant 152 : index
    %c0_74 = arith.constant 0 : index
    %140 = vector.load %arg3[%c152, %c0_74] : memref<240x128xf32, #tpu.memory_space<vmem>>, vector<64x32xf32>
    %c152_75 = arith.constant 152 : index
    %c32_76 = arith.constant 32 : index
    %141 = vector.load %arg3[%c152_75, %c32_76] : memref<240x128xf32, #tpu.memory_space<vmem>>, vector<32x64xf32>
    %c216 = arith.constant 216 : index
    %c0_77 = arith.constant 0 : index
    %142 = vector.load %arg3[%c216, %c0_77] : memref<240x128xf32, #tpu.memory_space<vmem>>, vector<1x96xf32>
    %c216_78 = arith.constant 216 : index
    %c96_79 = arith.constant 96 : index
    %143 = vector.load %arg3[%c216_78, %c96_79] : memref<240x128xf32, #tpu.memory_space<vmem>>, vector<1x32xf32>
    %c224 = arith.constant 224 : index
    %c0_80 = arith.constant 0 : index
    %144 = vector.load %arg3[%c224, %c0_80] : memref<240x128xf32, #tpu.memory_space<vmem>>, vector<1x64xf32>
    %c224_81 = arith.constant 224 : index
    %c64_82 = arith.constant 64 : index
    %145 = vector.load %arg3[%c224_81, %c64_82] : memref<240x128xf32, #tpu.memory_space<vmem>>, vector<1x32xf32>
    %c224_83 = arith.constant 224 : index
    %c96_84 = arith.constant 96 : index
    %146 = vector.load %arg3[%c224_83, %c96_84] : memref<240x128xf32, #tpu.memory_space<vmem>>, vector<1x32xf32>
    %c232 = arith.constant 232 : index
    %c0_85 = arith.constant 0 : index
    %147 = vector.load %arg3[%c232, %c0_85] : memref<240x128xf32, #tpu.memory_space<vmem>>, vector<1x32xf32>
    %c232_86 = arith.constant 232 : index
    %c32_87 = arith.constant 32 : index
    %148 = vector.load %arg3[%c232_86, %c32_87] : memref<240x128xf32, #tpu.memory_space<vmem>>, vector<1x32xf32>
    %c232_88 = arith.constant 232 : index
    %c64_89 = arith.constant 64 : index
    %149 = vector.load %arg3[%c232_88, %c64_89] : memref<240x128xf32, #tpu.memory_space<vmem>>, vector<1x32xf32>
    %cst_90 = arith.constant dense<0.000000e+00> : vector<32x32xf32>
    %150 = tpu.matmul %0, %137, %cst_90 {dimension_numbers = #tpu.dot_dimension_numbers<[1], [0], [0], [1], [0, 0, 1, 1], [], []>} : vector<32x16xf32>, vector<16x32xf32>, vector<32x32xf32> -> vector<32x32xf32>
    %cst_91 = arith.constant dense<0.000000e+00> : vector<32x96xf32>
    %151 = tpu.matmul %150, %138, %cst_91 {dimension_numbers = #tpu.dot_dimension_numbers<[1], [0], [0], [1], [0, 0, 1, 1], [], []>} : vector<32x32xf32>, vector<32x96xf32>, vector<32x96xf32> -> vector<32x96xf32>
    %152 = vector.broadcast %142 : vector<1x96xf32> to vector<32x96xf32>
    %153 = arith.addf %151, %152 : vector<32x96xf32>
    %154 = vector.extract_strided_slice %153 {offsets = [0, 0], sizes = [32, 32], strides = [1, 1]} : vector<32x96xf32> to vector<32x32xf32>
    %155 = arith.mulf %154, %1 : vector<32x32xf32>
    %156 = vector.extract_strided_slice %153 {offsets = [0, 32], sizes = [32, 32], strides = [1, 1]} : vector<32x96xf32> to vector<32x32xf32>
    %157 = vector.extract_strided_slice %153 {offsets = [0, 64], sizes = [32, 32], strides = [1, 1]} : vector<32x96xf32> to vector<32x32xf32>
    %158 = tpu.transpose %156, [1, 0] : vector<32x32xf32> -> vector<32x32xf32>
    %cst_92 = arith.constant dense<0.000000e+00> : vector<32x32xf32>
    %159 = tpu.matmul %155, %158, %cst_92 {dimension_numbers = #tpu.dot_dimension_numbers<[1], [0], [0], [1], [0, 0, 1, 1], [], []>} : vector<32x32xf32>, vector<32x32xf32>, vector<32x32xf32> -> vector<32x32xf32>
    %160 = arith.addf %159, %2 : vector<32x32xf32>
    %cst_93 = arith.constant dense<0xFF800000> : vector<32xf32>
    %161 = vector.multi_reduction <maximumf>, %160, %cst_93 [1] : vector<32x32xf32> to vector<32xf32>
    %162 = vector.shape_cast %161 : vector<32xf32> to vector<32x1xf32>
    %163 = vector.broadcast %162 : vector<32x1xf32> to vector<32x32xf32>
    %164 = arith.subf %160, %163 : vector<32x32xf32>
    %165 = math.exp %164 : vector<32x32xf32>
    %cst_94 = arith.constant dense<0.000000e+00> : vector<32xf32>
    %166 = vector.multi_reduction <add>, %165, %cst_94 [1] : vector<32x32xf32> to vector<32xf32>
    %167 = vector.shape_cast %166 : vector<32xf32> to vector<32x1xf32>
    %168 = tpu.reciprocal %167 {approx = true} : vector<32x1xf32> -> vector<32x1xf32>
    %169 = vector.broadcast %168 : vector<32x1xf32> to vector<32x32xf32>
    %170 = arith.mulf %165, %169 : vector<32x32xf32>
    %cst_95 = arith.constant dense<0.000000e+00> : vector<32x32xf32>
    %171 = tpu.matmul %170, %157, %cst_95 {dimension_numbers = #tpu.dot_dimension_numbers<[1], [0], [0], [1], [0, 0, 1, 1], [], []>} : vector<32x32xf32>, vector<32x32xf32>, vector<32x32xf32> -> vector<32x32xf32>
    %172 = arith.mulf %171, %1 : vector<32x32xf32>
    %cst_96 = arith.constant dense<0.000000e+00> : vector<16x32xf32>
    %173 = tpu.matmul %3, %172, %cst_96 {dimension_numbers = #tpu.dot_dimension_numbers<[1], [0], [0], [1], [0, 0, 1, 1], [], []>} : vector<16x32xf32>, vector<32x32xf32>, vector<16x32xf32> -> vector<16x32xf32>
    %cst_97 = arith.constant dense<0.000000e+00> : vector<16x32xf32>
    %174 = tpu.matmul %173, %139, %cst_97 {dimension_numbers = #tpu.dot_dimension_numbers<[1], [0], [0], [1], [0, 0, 1, 1], [], []>} : vector<16x32xf32>, vector<32x32xf32>, vector<16x32xf32> -> vector<16x32xf32>
    %175 = vector.broadcast %143 : vector<1x32xf32> to vector<16x32xf32>
    %176 = arith.addf %174, %175 : vector<16x32xf32>
    %177 = arith.addf %137, %176 : vector<16x32xf32>
    %cst_98 = arith.constant dense<0.000000e+00> : vector<16xf32>
    %178 = vector.multi_reduction <add>, %177, %cst_98 [1] : vector<16x32xf32> to vector<16xf32>
    %179 = vector.shape_cast %178 : vector<16xf32> to vector<16x1xf32>
    %cst_99 = arith.constant 3.200000e+01 : f32
    %180 = vector.broadcast %cst_99 : f32 to vector<16x1xf32>
    %181 = arith.divf %179, %180 : vector<16x1xf32>
    %182 = vector.broadcast %181 : vector<16x1xf32> to vector<16x32xf32>
    %183 = arith.subf %177, %182 : vector<16x32xf32>
    %184 = arith.mulf %183, %183 : vector<16x32xf32>
    %cst_100 = arith.constant dense<0.000000e+00> : vector<16xf32>
    %185 = vector.multi_reduction <add>, %184, %cst_100 [1] : vector<16x32xf32> to vector<16xf32>
    %186 = vector.shape_cast %185 : vector<16xf32> to vector<16x1xf32>
    %cst_101 = arith.constant 3.200000e+01 : f32
    %187 = vector.broadcast %cst_101 : f32 to vector<16x1xf32>
    %188 = arith.divf %186, %187 : vector<16x1xf32>
    %189 = vector.broadcast %181 : vector<16x1xf32> to vector<16x32xf32>
    %190 = arith.subf %177, %189 : vector<16x32xf32>
    %cst_102 = arith.constant 9.99999974E-6 : f32
    %191 = vector.broadcast %cst_102 : f32 to vector<16x1xf32>
    %192 = arith.addf %188, %191 : vector<16x1xf32>
    %193 = math.rsqrt %192 : vector<16x1xf32>
    %194 = vector.broadcast %193 : vector<16x1xf32> to vector<16x32xf32>
    %195 = arith.mulf %190, %194 : vector<16x32xf32>
    %196 = vector.broadcast %146 : vector<1x32xf32> to vector<16x32xf32>
    %197 = arith.mulf %195, %196 : vector<16x32xf32>
    %198 = vector.broadcast %147 : vector<1x32xf32> to vector<16x32xf32>
    %199 = arith.addf %197, %198 : vector<16x32xf32>
    %cst_103 = arith.constant dense<0.000000e+00> : vector<16x64xf32>
    %200 = tpu.matmul %199, %141, %cst_103 {dimension_numbers = #tpu.dot_dimension_numbers<[1], [0], [0], [1], [0, 0, 1, 1], [], []>} : vector<16x32xf32>, vector<32x64xf32>, vector<16x64xf32> -> vector<16x64xf32>
    %201 = vector.broadcast %144 : vector<1x64xf32> to vector<16x64xf32>
    %202 = arith.addf %200, %201 : vector<16x64xf32>
    %cst_104 = arith.constant 0.000000e+00 : f32
    %203 = vector.broadcast %cst_104 : f32 to vector<16x64xf32>
    %204 = arith.maximumf %202, %203 : vector<16x64xf32>
    %cst_105 = arith.constant dense<0.000000e+00> : vector<16x32xf32>
    %205 = tpu.matmul %204, %140, %cst_105 {dimension_numbers = #tpu.dot_dimension_numbers<[1], [0], [0], [1], [0, 0, 1, 1], [], []>} : vector<16x64xf32>, vector<64x32xf32>, vector<16x32xf32> -> vector<16x32xf32>
    %206 = vector.broadcast %145 : vector<1x32xf32> to vector<16x32xf32>
    %207 = arith.addf %205, %206 : vector<16x32xf32>
    %208 = arith.addf %199, %207 : vector<16x32xf32>
    %cst_106 = arith.constant dense<0.000000e+00> : vector<16xf32>
    %209 = vector.multi_reduction <add>, %208, %cst_106 [1] : vector<16x32xf32> to vector<16xf32>
    %210 = vector.shape_cast %209 : vector<16xf32> to vector<16x1xf32>
    %cst_107 = arith.constant 3.200000e+01 : f32
    %211 = vector.broadcast %cst_107 : f32 to vector<16x1xf32>
    %212 = arith.divf %210, %211 : vector<16x1xf32>
    %213 = vector.broadcast %212 : vector<16x1xf32> to vector<16x32xf32>
    %214 = arith.subf %208, %213 : vector<16x32xf32>
    %215 = arith.mulf %214, %214 : vector<16x32xf32>
    %cst_108 = arith.constant dense<0.000000e+00> : vector<16xf32>
    %216 = vector.multi_reduction <add>, %215, %cst_108 [1] : vector<16x32xf32> to vector<16xf32>
    %217 = vector.shape_cast %216 : vector<16xf32> to vector<16x1xf32>
    %cst_109 = arith.constant 3.200000e+01 : f32
    %218 = vector.broadcast %cst_109 : f32 to vector<16x1xf32>
    %219 = arith.divf %217, %218 : vector<16x1xf32>
    %220 = vector.broadcast %212 : vector<16x1xf32> to vector<16x32xf32>
    %221 = arith.subf %208, %220 : vector<16x32xf32>
    %cst_110 = arith.constant 9.99999974E-6 : f32
    %222 = vector.broadcast %cst_110 : f32 to vector<16x1xf32>
    %223 = arith.addf %219, %222 : vector<16x1xf32>
    %224 = math.rsqrt %223 : vector<16x1xf32>
    %225 = vector.broadcast %224 : vector<16x1xf32> to vector<16x32xf32>
    %226 = arith.mulf %221, %225 : vector<16x32xf32>
    %227 = vector.broadcast %148 : vector<1x32xf32> to vector<16x32xf32>
    %228 = arith.mulf %226, %227 : vector<16x32xf32>
    %229 = vector.broadcast %149 : vector<1x32xf32> to vector<16x32xf32>
    %230 = arith.addf %228, %229 : vector<16x32xf32>
    %c0_111 = arith.constant 0 : index
    %c0_112 = arith.constant 0 : index
    %231 = vector.load %arg4[%c0_111, %c0_112] : memref<40x128xf32, #tpu.memory_space<vmem>>, vector<32x128xf32>
    %c32_113 = arith.constant 32 : index
    %c0_114 = arith.constant 0 : index
    %232 = vector.load %arg4[%c32_113, %c0_114] : memref<40x128xf32, #tpu.memory_space<vmem>>, vector<1x128xf32>
    %cst_115 = arith.constant dense<0.000000e+00> : vector<16x128xf32>
    %233 = tpu.matmul %230, %231, %cst_115 {dimension_numbers = #tpu.dot_dimension_numbers<[1], [0], [0], [1], [0, 0, 1, 1], [], []>} : vector<16x32xf32>, vector<32x128xf32>, vector<16x128xf32> -> vector<16x128xf32>
    %234 = vector.broadcast %232 : vector<1x128xf32> to vector<16x128xf32>
    %235 = arith.addf %233, %234 : vector<16x128xf32>
    %c0_116 = arith.constant 0 : index
    %c0_117 = arith.constant 0 : index
    %236 = vector.load %arg5[%c0_116, %c0_117] : memref<16x128xf32, #tpu.memory_space<vmem>>, vector<16x128xf32>
    tpu.vector_store %arg5[%c0_116, %c0_117], %235 {strides = array<i32>} : memref<16x128xf32, #tpu.memory_space<vmem>>, vector<16x128xf32>,
    return
  }
}

</mosaic_0001>

<llo_original>
// kernel: ner_classifier_forward.1
$region0: #{ner_classifier_forward.1}
  #allocation0 [shape = 'u32[]', space=smem, size = 0x4, offset = 0x4, fixed_abs, tag = 'smem constant byte address 0x4 - core index']
  #allocation1 [shape = 'u32[72,128]{1,0:T(1,128)}', space=vmem, size = 0x9000, scoped, tag = 'internal scratch']
  %s0 = inlined_call_operand.vmem [shape: s32[16,1], index: 0, kind: input, shape index: {}]
  %s1 = inlined_call_operand.vmem [shape: f32[32,128], index: 1, kind: input, shape index: {}]
  %s2 = inlined_call_operand.vmem [shape: f32[64,128], index: 2, kind: input, shape index: {}]
  %s3 = inlined_call_operand.vmem [shape: f32[240,128], index: 3, kind: input, shape index: {}]
  %s4 = inlined_call_operand.vmem [shape: f32[40,128], index: 4, kind: input, shape index: {}]
  %s5 = inlined_call_operand.vmem [shape: f32[16,128], index: 5, kind: output, shape index: {}]
  %s6 = sld [smem:[#allocation0]]
  $region30: #{ner_classifier_forward.1} parent=0
    _
  %s8 = ssub.s32 1, %s6
  %s9 = scalar_select 0, %s8, %s6
  // Predicated region
  $region2: #{ner_classifier_forward.1} parent=0 // pred_check
    _
  $region3: #{ner_classifier_forward.1} parent=0 // pred_check_branch
    %11 = sbr.rel (0) target = $region5
  $region4: #{ner_classifier_forward.1} parent=0 // pred_region
    _
  $region5: #{ner_classifier_forward.1} parent=0 // pred_fallthru
    _
  // Predicated region
  $region6: #{ner_classifier_forward.1} parent=0 // pred_check
    _
  $region7: #{ner_classifier_forward.1} parent=0 // pred_check_branch
    %13 = sbr.rel (0) target = $region9
  $region8: #{ner_classifier_forward.1} parent=0 // pred_region
    _
  $region9: #{ner_classifier_forward.1} parent=0 // pred_fallthru
    _
  // Predicated region
  $region10: #{ner_classifier_forward.1} parent=0 // pred_check
    _
  $region11: #{ner_classifier_forward.1} parent=0 // pred_check_branch
    %15 = sbr.rel (0) target = $region13
  $region12: #{ner_classifier_forward.1} parent=0 // pred_region
    _
  $region13: #{ner_classifier_forward.1} parent=0 // pred_fallthru
    _
  // Predicated region
  $region14: #{ner_classifier_forward.1} parent=0 // pred_check
    _
  $region15: #{ner_classifier_forward.1} parent=0 // pred_check_branch
    %17 = sbr.rel (0) target = $region17
  $region16: #{ner_classifier_forward.1} parent=0 // pred_region
    _
  $region17: #{ner_classifier_forward.1} parent=0 // pred_fallthru
    _
  // Predicated region
  $region18: #{ner_classifier_forward.1} parent=0 // pred_check
    _
  $region19: #{ner_classifier_forward.1} parent=0 // pred_check_branch
    %19 = sbr.rel (0) target = $region21
  $region20: #{ner_classifier_forward.1} parent=0 // pred_region
    _
  $region21: #{ner_classifier_forward.1} parent=0 // pred_fallthru
    _
  %v20 = vld [vmem:[%s1] sm:$0xff]
  %v21 = vld [vmem:[%s1 + $0x8] sm:$0xff]
  %v22 = vld [vmem:[%s1 + $0x10] sm:$0xff]
  %v23 = vld [vmem:[%s1 + $0x18] sm:$0xff]
  %v24 = vld [vmem:[%s1] sm:$0xff]
  %v25 = vld [vmem:[%s1 + $0x8] sm:$0xff]
  %v26 = vld [vmem:[%s0] sm:$0xff]
  %v27 = vld [vmem:[%s0 + $0x8] sm:$0xff]
  %v28 = vlaneseq
  %v29 = vand.u32 %v28, 127
  %30 = vset.pattern.permute.xlu0 0
  %31 = vperm.xlu0 %30, %v26
  %v32 = vpop.permute.xlu0 %31
  %33 = vset.pattern.permute.xlu0 0
  %34 = vperm.xlu0 %33, %v27
  %v35 = vpop.permute.xlu0 %34
  %vm36 = vcmp.eq.s32.totalorder %v29, %v32
  %vm37 = vcmp.eq.s32.totalorder %v29, %v35
  %v38 = vsel %vm36, 1, 0
  %v39 = vsel %vm37, 1, 0
  %v40 = vcvt.s32.f32 %v38
  %v41 = vcvt.s32.f32 %v39
  %v42 = vld [vmem:[%s2] sm:$0xff]
  %v43 = vld [vmem:[%s2 + $0x8] sm:$0xff]
  %v44 = vld [vmem:[%s2 + $0x10] sm:$0xff]
  %v45 = vld [vmem:[%s2 + $0x18] sm:$0xff]
  %v46 = vld [vmem:[%s2 + $0x20] sm:$0xff]
  %v47 = vld [vmem:[%s2 + $0x28] sm:$0xff]
  %v48 = vld [vmem:[%s2 + $0x30] sm:$0xff]
  %v49 = vld [vmem:[%s2 + $0x38] sm:$0xff]
  %vm50 = vcmask 523264
  %v52 = vsel %vm50, %v40, 0
  %v55 = vsel %vm50, %v41, 0
  %57 = vmatpush.msra.mxu0 0.0
  %58 = vmatpush.msra.mxu0 0.0
  %59 = vmatpush.msra.mxu0 0.0
  %60 = vmatpush.msra.mxu0 0.0
  %61 = vmatpush.msra.mxu0 0.0
  %62 = vmatpush.msra.mxu0 0.0
  %63 = vmatpush.msra.mxu0 0.0
  %64 = vmatpush.msra.mxu0 0.0
  %65 = vmatpush.msra.mxu0 %v49
  %66 = vmatpush.msra.mxu0 %v48
  %67 = vmatpush.msra.mxu0 %v47
  %68 = vmatpush.msra.mxu0 %v46
  %69 = vmatpush.msra.mxu0 %v45
  %70 = vmatpush.msra.mxu0 %v44
  %71 = vmatpush.msra.mxu0 %v43
  %72 = vmatpush.msra.mxu0 %v42
  %73 = vmatmul.f32.gmra.mxu0 %v52
  %v74 = vpop.f32.mrf.mxu0
  %v75 = vadd.f32 0.0, %v74
  %76 = vmatmul.f32.gmra.mxu0 %v55
  %v77 = vpop.f32.mrf.mxu0
  %v78 = vadd.f32 0.0, %v77
  %79 = vdwg.mxu0
  %v80 = vld [vmem:[%s2] sm:$0xff]
  %v81 = vld [vmem:[%s2 + $0x8] sm:$0xff]
  %v82 = vld [vmem:[%s2 + $0x10] sm:$0xff]
  %v83 = vld [vmem:[%s2 + $0x18] sm:$0xff]
  %v84 = vld [vmem:[%s2 + $0x20] sm:$0x1]
  %v85 = vperm.slane %v84, 0
  %90 = vrot.lane.b32.xlu0 %v80, 96
  %v91 = vpop.permute.xlu0 %90
  %92 = vrot.lane.b32.xlu0 %v81, 96
  %v93 = vpop.permute.xlu0 %92
  %94 = vrot.lane.b32.xlu0 %v82, 96
  %v95 = vpop.permute.xlu0 %94
  %96 = vrot.lane.b32.xlu0 %v83, 96
  %v97 = vpop.permute.xlu0 %96
  %103 = vrot.lane.b32.xlu0 %v85, 96
  %v104 = vpop.permute.xlu0 %103
  %vm106 = vcmask 261120
  %v108 = vsel %vm106, %v75, 0
  %v111 = vsel %vm106, %v78, 0
  %113 = vmatpush.msra.mxu0 0.0
  %114 = vmatpush.msra.mxu0 0.0
  %115 = vmatpush.msra.mxu0 0.0
  %116 = vmatpush.msra.mxu0 0.0
  %117 = vmatpush.msra.mxu0 0.0
  %118 = vmatpush.msra.mxu0 0.0
  %119 = vmatpush.msra.mxu0 0.0
  %120 = vmatpush.msra.mxu0 0.0
  %121 = vmatpush.msra.mxu0 0.0
  %122 = vmatpush.msra.mxu0 0.0
  %123 = vmatpush.msra.mxu0 0.0
  %124 = vmatpush.msra.mxu0 0.0
  %125 = vmatpush.msra.mxu0 %v97
  %126 = vmatpush.msra.mxu0 %v95
  %127 = vmatpush.msra.mxu0 %v93
  %128 = vmatpush.msra.mxu0 %v91
  %129 = vmatmul.f32.gmra.mxu0 %v108
  %v130 = vpop.f32.mrf.mxu0
  %v131 = vadd.f32 %v104, %v130
  %132 = vmatmul.f32.gmra.mxu0 %v111
  %v133 = vpop.f32.mrf.mxu0
  %v134 = vadd.f32 %v104, %v133
  %135 = vdwg.mxu0
  %vm136 = vcmp.gt.f32.partialorder %v131, 0.0
  %vm137 = vcmp.gt.f32.partialorder %v134, 0.0
  %v138 = vmul.f32 %v131, 0.01
  %v139 = vmul.f32 %v134, 0.01
  %v140 = vsel %vm136, %v131, %v138
  %v141 = vsel %vm137, %v134, %v139
  %142 = vrot.lane.b32.xlu0 %v80, 64
  %v143 = vpop.permute.xlu0 %142
  %144 = vrot.lane.b32.xlu0 %v81, 64
  %v145 = vpop.permute.xlu0 %144
  %146 = vrot.lane.b32.xlu0 %v82, 64
  %v147 = vpop.permute.xlu0 %146
  %148 = vrot.lane.b32.xlu0 %v83, 64
  %v149 = vpop.permute.xlu0 %148
  %154 = vrot.lane.b32.xlu0 %v85, 64
  %v155 = vpop.permute.xlu0 %154
  %v158 = vsel %vm106, %v140, 0
  %v161 = vsel %vm106, %v141, 0
  %163 = vmatpush.msra.mxu0 0.0
  %164 = vmatpush.msra.mxu0 0.0
  %165 = vmatpush.msra.mxu0 0.0
  %166 = vmatpush.msra.mxu0 0.0
  %167 = vmatpush.msra.mxu0 0.0
  %168 = vmatpush.msra.mxu0 0.0
  %169 = vmatpush.msra.mxu0 0.0
  %170 = vmatpush.msra.mxu0 0.0
  %171 = vmatpush.msra.mxu0 0.0
  %172 = vmatpush.msra.mxu0 0.0
  %173 = vmatpush.msra.mxu0 0.0
  %174 = vmatpush.msra.mxu0 0.0
  %175 = vmatpush.msra.mxu0 %v149
  %176 = vmatpush.msra.mxu0 %v147
  %177 = vmatpush.msra.mxu0 %v145
  %178 = vmatpush.msra.mxu0 %v143
  %179 = vmatmul.f32.gmra.mxu0 %v158
  %v180 = vpop.f32.mrf.mxu0
  %v181 = vadd.f32 %v155, %v180
  %182 = vmatmul.f32.gmra.mxu0 %v161
  %v183 = vpop.f32.mrf.mxu0
  %v184 = vadd.f32 %v155, %v183
  %185 = vdwg.mxu0
  %vm186 = vcmp.gt.f32.partialorder %v181, 0.0
  %vm187 = vcmp.gt.f32.partialorder %v184, 0.0
  %v188 = vmul.f32 %v181, 0.01
  %v189 = vmul.f32 %v184, 0.01
  %v190 = vsel %vm186, %v181, %v188
  %v191 = vsel %vm187, %v184, %v189
  %192 = vrot.lane.b32.xlu0 %v80, 32
  %v193 = vpop.permute.xlu0 %192
  %194 = vrot.lane.b32.xlu0 %v81, 32
  %v195 = vpop.permute.xlu0 %194
  %196 = vrot.lane.b32.xlu0 %v82, 32
  %v197 = vpop.permute.xlu0 %196
  %198 = vrot.lane.b32.xlu0 %v83, 32
  %v199 = vpop.permute.xlu0 %198
  %204 = vrot.lane.b32.xlu0 %v85, 32
  %v205 = vpop.permute.xlu0 %204
  %v208 = vsel %vm106, %v190, 0
  %v211 = vsel %vm106, %v191, 0
  %213 = vmatpush.msra.mxu0 0.0
  %214 = vmatpush.msra.mxu0 0.0
  %215 = vmatpush.msra.mxu0 0.0
  %216 = vmatpush.msra.mxu0 0.0
  %217 = vmatpush.msra.mxu0 0.0
  %218 = vmatpush.msra.mxu0 0.0
  %219 = vmatpush.msra.mxu0 0.0
  %220 = vmatpush.msra.mxu0 0.0
  %221 = vmatpush.msra.mxu0 0.0
  %222 = vmatpush.msra.mxu0 0.0
  %223 = vmatpush.msra.mxu0 0.0
  %224 = vmatpush.msra.mxu0 0.0
  %225 = vmatpush.msra.mxu0 %v199
  %226 = vmatpush.msra.mxu0 %v197
  %227 = vmatpush.msra.mxu0 %v195
  %228 = vmatpush.msra.mxu0 %v193
  %229 = vmatmul.f32.gmra.mxu0 %v208
  %v230 = vpop.f32.mrf.mxu0
  %v231 = vadd.f32 %v205, %v230
  %232 = vmatmul.f32.gmra.mxu0 %v211
  %v233 = vpop.f32.mrf.mxu0
  %v234 = vadd.f32 %v205, %v233
  %235 = vdwg.mxu0
  %v236 = vadd.f32 %v140, %v231
  %v237 = vadd.f32 %v141, %v234
  %vm238 = vcmp.gt.f32.partialorder %v236, 0.0
  %vm239 = vcmp.gt.f32.partialorder %v237, 0.0
  %v240 = vmul.f32 %v236, 0.01
  %v241 = vmul.f32 %v237, 0.01
  %v242 = vsel %vm238, %v236, %v240
  %v243 = vsel %vm239, %v237, %v241
  %246 = vrot.lane.b32.xlu0 %v22, 48
  %v247 = vpop.permute.xlu0 %246
  %248 = vrot.lane.b32.xlu0 %v23, 48
  %v249 = vpop.permute.xlu0 %248
  %v252 = vadd.f32 %v242, %v247
  %v253 = vadd.f32 %v243, %v249
  %v254 = vld [vmem:[%s3] sm:$0xff]
  %v255 = vld [vmem:[%s3 + $0x8] sm:$0xff]
  %v256 = vld [vmem:[%s3 + $0x10] sm:$0xff]
  %v257 = vld [vmem:[%s3 + $0x18] sm:$0xff]
  %v258 = vld [vmem:[%s3 + $0x20] sm:$0xff]
  %v259 = vld [vmem:[%s3 + $0x28] sm:$0xff]
  %v260 = vld [vmem:[%s3 + $0x30] sm:$0xff]
  %v261 = vld [vmem:[%s3 + $0x38] sm:$0xff]
  %v262 = vld [vmem:[%s3 + $0x40] sm:$0xff]
  %v263 = vld [vmem:[%s3 + $0x48] sm:$0xff]
  %v264 = vld [vmem:[%s3 + $0x50] sm:$0xff]
  %v265 = vld [vmem:[%s3 + $0x58] sm:$0xff]
  %v266 = vld [vmem:[%s3 + $0x60] sm:$0x1]
  %v267 = vld [vmem:[%s3 + $0x68] sm:$0x1]
  %v268 = vld [vmem:[%s3 + $0x70] sm:$0x1]
  %vm269 = vcmask 130048
  %v271 = vsel %vm269, %v20, 0
  %v274 = vsel %vm269, %v21, 0
  %v276 = vsel %vm269, %v22, 0
  %v278 = vsel %vm269, %v23, 0
  %280 = vmatpush.msra.mxu0 0.0
  %281 = vmatpush.msra.mxu0 0.0
  %282 = vmatpush.msra.mxu0 0.0
  %283 = vmatpush.msra.mxu0 0.0
  %284 = vmatpush.msra.mxu0 0.0
  %285 = vmatpush.msra.mxu0 0.0
  %286 = vmatpush.msra.mxu0 0.0
  %287 = vmatpush.msra.mxu0 0.0
  %288 = vmatpush.msra.mxu0 0.0
  %289 = vmatpush.msra.mxu0 0.0
  %290 = vmatpush.msra.mxu0 0.0
  %291 = vmatpush.msra.mxu0 0.0
  %292 = vmatpush.msra.mxu0 0.0
  %293 = vmatpush.msra.mxu0 0.0
  %294 = vmatpush.msra.mxu0 %v253
  %295 = vmatpush.msra.mxu0 %v252
  %296 = vmatmul.f32.gmra.mxu0 %v271
  %v297 = vpop.f32.mrf.mxu0
  %v298 = vadd.f32 0.0, %v297
  %299 = vmatmul.f32.gmra.mxu0 %v274
  %v300 = vpop.f32.mrf.mxu0
  %v301 = vadd.f32 0.0, %v300
  %302 = vmatmul.f32.gmra.mxu0 %v276
  %v303 = vpop.f32.mrf.mxu0
  %v304 = vadd.f32 0.0, %v303
  %305 = vmatmul.f32.gmra.mxu0 %v278
  %v306 = vpop.f32.mrf.mxu0
  %v307 = vadd.f32 0.0, %v306
  %308 = vdwg.mxu0
  %v309 = vperm.slane %v266, 0
  %v311 = vsel %vm106, %v298, 0
  %v314 = vsel %vm106, %v301, 0
  %v317 = vsel %vm106, %v304, 0
  %v320 = vsel %vm106, %v307, 0
  %322 = vmatpush.msra.mxu0 0.0
  %323 = vmatpush.msra.mxu0 0.0
  %324 = vmatpush.msra.mxu0 0.0
  %325 = vmatpush.msra.mxu0 0.0
  %326 = vmatpush.msra.mxu0 0.0
  %327 = vmatpush.msra.mxu0 0.0
  %328 = vmatpush.msra.mxu0 0.0
  %329 = vmatpush.msra.mxu0 0.0
  %330 = vmatpush.msra.mxu0 0.0
  %331 = vmatpush.msra.mxu0 0.0
  %332 = vmatpush.msra.mxu0 0.0
  %333 = vmatpush.msra.mxu0 0.0
  %334 = vmatpush.msra.mxu0 %v257
  %335 = vmatpush.msra.mxu0 %v256
  %336 = vmatpush.msra.mxu0 %v255
  %337 = vmatpush.msra.mxu0 %v254
  %338 = vmatmul.f32.gmra.mxu0 %v311
  %v339 = vpop.f32.mrf.mxu0
  %v340 = vadd.f32 %v309, %v339
  %341 = vmatmul.f32.gmra.mxu0 %v314
  %v342 = vpop.f32.mrf.mxu0
  %v343 = vadd.f32 %v309, %v342
  %344 = vmatmul.f32.gmra.mxu0 %v317
  %v345 = vpop.f32.mrf.mxu0
  %v346 = vadd.f32 %v309, %v345
  %347 = vmatmul.f32.gmra.mxu0 %v320
  %v348 = vpop.f32.mrf.mxu0
  %v349 = vadd.f32 %v309, %v348
  %350 = vdwg.mxu0
  %351 = vrot.lane.b32.xlu0 %v20, 112
  %v352 = vpop.permute.xlu0 %351
  %353 = vrot.lane.b32.xlu0 %v21, 112
  %v354 = vpop.permute.xlu0 %353
  %355 = vrot.lane.b32.xlu0 %v22, 112
  %v356 = vpop.permute.xlu0 %355
  %357 = vrot.lane.b32.xlu0 %v23, 112
  %v358 = vpop.permute.xlu0 %357
  %v363 = vmul.f32 %v340, %v352
  %v364 = vmul.f32 %v343, %v354
  %v365 = vmul.f32 %v346, %v356
  %v366 = vmul.f32 %v349, %v358
  %371 = vrot.lane.b32.xlu0 %v340, 96
  %v372 = vpop.permute.xlu0 %371
  %373 = vrot.lane.b32.xlu0 %v343, 96
  %v374 = vpop.permute.xlu0 %373
  %375 = vrot.lane.b32.xlu0 %v346, 96
  %v376 = vpop.permute.xlu0 %375
  %377 = vrot.lane.b32.xlu0 %v349, 96
  %v378 = vpop.permute.xlu0 %377
  %379 = vrot.lane.b32.xlu0 %v20, 80
  %v380 = vpop.permute.xlu0 %379
  %381 = vrot.lane.b32.xlu0 %v21, 80
  %v382 = vpop.permute.xlu0 %381
  %383 = vrot.lane.b32.xlu0 %v22, 80
  %v384 = vpop.permute.xlu0 %383
  %385 = vrot.lane.b32.xlu0 %v23, 80
  %v386 = vpop.permute.xlu0 %385
  %v392 = vsel %vm106, %v363, 0
  %v395 = vsel %vm106, %v364, 0
  %v398 = vsel %vm106, %v365, 0
  %v401 = vsel %vm106, %v366, 0
  %v403 = vsel %vm106, %v372, 0
  %v405 = vsel %vm106, %v374, 0
  %v407 = vsel %vm106, %v376, 0
  %v409 = vsel %vm106, %v378, 0
  %411 = vmatpush.xpose.msra.mxu0 0.0
  %412 = vmatpush.xpose.msra.mxu0 0.0
  %413 = vmatpush.xpose.msra.mxu0 0.0
  %414 = vmatpush.xpose.msra.mxu0 0.0
  %415 = vmatpush.xpose.msra.mxu0 0.0
  %416 = vmatpush.xpose.msra.mxu0 0.0
  %417 = vmatpush.xpose.msra.mxu0 0.0
  %418 = vmatpush.xpose.msra.mxu0 0.0
  %419 = vmatpush.xpose.msra.mxu0 0.0
  %420 = vmatpush.xpose.msra.mxu0 0.0
  %421 = vmatpush.xpose.msra.mxu0 0.0
  %422 = vmatpush.xpose.msra.mxu0 0.0
  %423 = vmatpush.xpose.msra.mxu0 %v409
  %424 = vmatpush.xpose.msra.mxu0 %v407
  %425 = vmatpush.xpose.msra.mxu0 %v405
  %426 = vmatpush.xpose.msra.mxu0 %v403
  %427 = vmatmul.f32.gmra.mxu0 %v392
  %v428 = vpop.f32.mrf.mxu0
  %v429 = vadd.f32 %v380, %v428
  %430 = vmatmul.f32.gmra.mxu0 %v395
  %v431 = vpop.f32.mrf.mxu0
  %v432 = vadd.f32 %v382, %v431
  %433 = vmatmul.f32.gmra.mxu0 %v398
  %v434 = vpop.f32.mrf.mxu0
  %v435 = vadd.f32 %v384, %v434
  %436 = vmatmul.f32.gmra.mxu0 %v401
  %v437 = vpop.f32.mrf.mxu0
  %v438 = vadd.f32 %v386, %v437
  %439 = vdwg.mxu0
  %v440 = vsel %vm106, %v429, -inf
  %441 = vmax.xlane.f32.xlu0 %v440
  %v442 = vpop.xlane.xlu0 %441
  %v443 = vsel %vm106, %v432, -inf
  %444 = vmax.xlane.f32.xlu0 %v443
  %v445 = vpop.xlane.xlu0 %444
  %v446 = vsel %vm106, %v435, -inf
  %447 = vmax.xlane.f32.xlu0 %v446
  %v448 = vpop.xlane.xlu0 %447
  %v449 = vsel %vm106, %v438, -inf
  %450 = vmax.xlane.f32.xlu0 %v449
  %v451 = vpop.xlane.xlu0 %450
  %v452 = vsub.f32 %v429, %v442
  %v453 = vsub.f32 %v432, %v445
  %v454 = vsub.f32 %v435, %v448
  %v455 = vsub.f32 %v438, %v451
  %v456 = vmul.f32 %v452, 1.442695
  %v457 = vpow.pop %v456
  %v458 = vmul.f32 %v453, 1.442695
  %v459 = vpow.pop %v458
  %v460 = vmul.f32 %v454, 1.442695
  %v461 = vpow.pop %v460
  %v462 = vmul.f32 %v455, 1.442695
  %v463 = vpow.pop %v462
  %v464 = vsel %vm106, %v457, 0.0
  %465 = vadd.xlane.f32.xlu0 %v464
  %v466 = vpop.xlane.xlu0 %465
  %v467 = vsel %vm106, %v459, 0.0
  %468 = vadd.xlane.f32.xlu0 %v467
  %v469 = vpop.xlane.xlu0 %468
  %v470 = vsel %vm106, %v461, 0.0
  %471 = vadd.xlane.f32.xlu0 %v470
  %v472 = vpop.xlane.xlu0 %471
  %v473 = vsel %vm106, %v463, 0.0
  %474 = vadd.xlane.f32.xlu0 %v473
  %v475 = vpop.xlane.xlu0 %474
  %v476 = vrcp.pop %v466
  %v477 = vrcp.pop %v469
  %v478 = vrcp.pop %v472
  %v479 = vrcp.pop %v475
  %v480 = vmul.f32 %v457, %v476
  %v481 = vmul.f32 %v459, %v477
  %v482 = vmul.f32 %v461, %v478
  %v483 = vmul.f32 %v463, %v479
  %484 = vrot.lane.b32.xlu0 %v340, 64
  %v485 = vpop.permute.xlu0 %484
  %486 = vrot.lane.b32.xlu0 %v343, 64
  %v487 = vpop.permute.xlu0 %486
  %488 = vrot.lane.b32.xlu0 %v346, 64
  %v489 = vpop.permute.xlu0 %488
  %490 = vrot.lane.b32.xlu0 %v349, 64
  %v491 = vpop.permute.xlu0 %490
  %v497 = vsel %vm106, %v480, 0
  %v500 = vsel %vm106, %v481, 0
  %v503 = vsel %vm106, %v482, 0
  %v506 = vsel %vm106, %v483, 0
  %508 = vmatpush.msra.mxu0 0.0
  %509 = vmatpush.msra.mxu0 0.0
  %510 = vmatpush.msra.mxu0 0.0
  %511 = vmatpush.msra.mxu0 0.0
  %512 = vmatpush.msra.mxu0 0.0
  %513 = vmatpush.msra.mxu0 0.0
  %514 = vmatpush.msra.mxu0 0.0
  %515 = vmatpush.msra.mxu0 0.0
  %516 = vmatpush.msra.mxu0 0.0
  %517 = vmatpush.msra.mxu0 0.0
  %518 = vmatpush.msra.mxu0 0.0
  %519 = vmatpush.msra.mxu0 0.0
  %520 = vmatpush.msra.mxu0 %v491
  %521 = vmatpush.msra.mxu0 %v489
  %522 = vmatpush.msra.mxu0 %v487
  %523 = vmatpush.msra.mxu0 %v485
  %524 = vmatmul.f32.gmra.mxu0 %v497
  %v525 = vpop.f32.mrf.mxu0
  %v526 = vadd.f32 0.0, %v525
  %527 = vmatmul.f32.gmra.mxu0 %v500
  %v528 = vpop.f32.mrf.mxu0
  %v529 = vadd.f32 0.0, %v528
  %530 = vmatmul.f32.gmra.mxu0 %v503
  %v531 = vpop.f32.mrf.mxu0
  %v532 = vadd.f32 0.0, %v531
  %533 = vmatmul.f32.gmra.mxu0 %v506
  %v534 = vpop.f32.mrf.mxu0
  %v535 = vadd.f32 0.0, %v534
  %536 = vdwg.mxu0
  %v537 = vmul.f32 %v526, %v352
  %v538 = vmul.f32 %v529, %v354
  %v539 = vmul.f32 %v532, %v356
  %v540 = vmul.f32 %v535, %v358
  %543 = vrot.lane.b32.xlu0 %v24, 48
  %v544 = vpop.permute.xlu0 %543
  %545 = vrot.lane.b32.xlu0 %v25, 48
  %v546 = vpop.permute.xlu0 %545
  %v547 = vsel %vm106, %v544, 0
  %v549 = vsel %vm106, %v546, 0
  %551 = vmatpush.msra.mxu0 0.0
  %552 = vmatpush.msra.mxu0 0.0
  %553 = vmatpush.msra.mxu0 0.0
  %554 = vmatpush.msra.mxu0 0.0
  %555 = vmatpush.msra.mxu0 0.0
  %556 = vmatpush.msra.mxu0 0.0
  %557 = vmatpush.msra.mxu0 0.0
  %558 = vmatpush.msra.mxu0 0.0
  %559 = vmatpush.msra.mxu0 0.0
  %560 = vmatpush.msra.mxu0 0.0
  %561 = vmatpush.msra.mxu0 0.0
  %562 = vmatpush.msra.mxu0 0.0
  %563 = vmatpush.msra.mxu0 %v540
  %564 = vmatpush.msra.mxu0 %v539
  %565 = vmatpush.msra.mxu0 %v538
  %566 = vmatpush.msra.mxu0 %v537
  %567 = vmatmul.f32.gmra.mxu0 %v547
  %v568 = vpop.f32.mrf.mxu0
  %v569 = vadd.f32 0.0, %v568
  %570 = vmatmul.f32.gmra.mxu0 %v549
  %v571 = vpop.f32.mrf.mxu0
  %v572 = vadd.f32 0.0, %v571
  %573 = vdwg.mxu0
  %578 = vrot.lane.b32.xlu0 %v254, 32
  %v579 = vpop.permute.xlu0 %578
  %580 = vrot.lane.b32.xlu0 %v255, 32
  %v581 = vpop.permute.xlu0 %580
  %582 = vrot.lane.b32.xlu0 %v256, 32
  %v583 = vpop.permute.xlu0 %582
  %584 = vrot.lane.b32.xlu0 %v257, 32
  %v585 = vpop.permute.xlu0 %584
  %591 = vrot.lane.b32.xlu0 %v309, 32
  %v592 = vpop.permute.xlu0 %591
  %v595 = vsel %vm106, %v569, 0
  %v598 = vsel %vm106, %v572, 0
  %600 = vmatpush.msra.mxu0 0.0
  %601 = vmatpush.msra.mxu0 0.0
  %602 = vmatpush.msra.mxu0 0.0
  %603 = vmatpush.msra.mxu0 0.0
  %604 = vmatpush.msra.mxu0 0.0
  %605 = vmatpush.msra.mxu0 0.0
  %606 = vmatpush.msra.mxu0 0.0
  %607 = vmatpush.msra.mxu0 0.0
  %608 = vmatpush.msra.mxu0 0.0
  %609 = vmatpush.msra.mxu0 0.0
  %610 = vmatpush.msra.mxu0 0.0
  %611 = vmatpush.msra.mxu0 0.0
  %612 = vmatpush.msra.mxu0 %v585
  %613 = vmatpush.msra.mxu0 %v583
  %614 = vmatpush.msra.mxu0 %v581
  %615 = vmatpush.msra.mxu0 %v579
  %616 = vmatmul.f32.gmra.mxu0 %v595
  %v617 = vpop.f32.mrf.mxu0
  %v618 = vadd.f32 %v592, %v617
  %619 = vmatmul.f32.gmra.mxu0 %v598
  %v620 = vpop.f32.mrf.mxu0
  %v621 = vadd.f32 %v592, %v620
  %622 = vdwg.mxu0
  %v623 = vadd.f32 %v252, %v618
  %v624 = vadd.f32 %v253, %v621
  %v625 = vsel %vm106, %v623, 0.0
  %626 = vadd.xlane.f32.xlu0 %v625
  %v627 = vpop.xlane.xlu0 %626
  %v628 = vsel %vm106, %v624, 0.0
  %629 = vadd.xlane.f32.xlu0 %v628
  %v630 = vpop.xlane.xlu0 %629
  %v631 = vrcp.pop 32.0
  %v632 = vmul.f32 32.0, %v631
  %v633 = vsub.f32 1.0, %v632
  %v634 = vmul.f32 %v631, %v633
  %v635 = vadd.f32 %v631, %v634
  %vm636 = vweird.f32 %v631
  %v637 = vsel %vm636, %v631, %v635
  %v638 = vmul.f32 %v627, %v637
  %v639 = vmul.f32 %v630, %v637
  %v640 = vsub.f32 %v623, %v638
  %v641 = vsub.f32 %v624, %v639
  %v642 = vmul.f32 %v640, %v640
  %v643 = vmul.f32 %v641, %v641
  %v644 = vsel %vm106, %v642, 0.0
  %645 = vadd.xlane.f32.xlu0 %v644
  %v646 = vpop.xlane.xlu0 %645
  %v647 = vsel %vm106, %v643, 0.0
  %648 = vadd.xlane.f32.xlu0 %v647
  %v649 = vpop.xlane.xlu0 %648
  %v650 = vmul.f32 %v646, %v637
  %v651 = vmul.f32 %v649, %v637
  %v652 = vadd.f32 %v650, 1e-05
  %v653 = vadd.f32 %v651, 1e-05
  %v654 = vrsqrt.pop %v652
  %v655 = vmul.f32 %v654, %v652
  %v656 = vmul.f32 %v655, %v654
  %v657 = vmul.f32 0.5, %v656
  %v658 = vsub.f32 1.5, %v657
  %v659 = vmul.f32 %v654, %v658
  %vm660 = vweird.f32 %v652
  %vm661 = vweird.f32 %v654
  %vm662 = vmor %vm660, %vm661
  %v663 = vsel %vm662, %v654, %v659
  %v664 = vrsqrt.pop %v653
  %v665 = vmul.f32 %v664, %v653
  %v666 = vmul.f32 %v665, %v664
  %v667 = vmul.f32 0.5, %v666
  %v668 = vsub.f32 1.5, %v667
  %v669 = vmul.f32 %v664, %v668
  %vm670 = vweird.f32 %v653
  %vm671 = vweird.f32 %v664
  %vm672 = vmor %vm670, %vm671
  %v673 = vsel %vm672, %v664, %v669
  %v674 = vmul.f32 %v640, %v663
  %v675 = vmul.f32 %v641, %v673
  %v676 = vperm.slane %v267, 0
  %678 = vrot.lane.b32.xlu0 %v676, 32
  %v679 = vpop.permute.xlu0 %678
  %v681 = vmul.f32 %v674, %v679
  %v682 = vmul.f32 %v675, %v679
  %v683 = vperm.slane %v268, 0
  %v684 = vadd.f32 %v681, %v683
  %v685 = vadd.f32 %v682, %v683
  %690 = vrot.lane.b32.xlu0 %v258, 96
  %v691 = vpop.permute.xlu0 %690
  %692 = vrot.lane.b32.xlu0 %v259, 96
  %v693 = vpop.permute.xlu0 %692
  %694 = vrot.lane.b32.xlu0 %v260, 96
  %v695 = vpop.permute.xlu0 %694
  %696 = vrot.lane.b32.xlu0 %v261, 96
  %v697 = vpop.permute.xlu0 %696
  %v703 = vsel %vm106, %v684, 0
  %v706 = vsel %vm106, %v685, 0
  %708 = vmatpush.msra.mxu0 0.0
  %709 = vmatpush.msra.mxu0 0.0
  %710 = vmatpush.msra.mxu0 0.0
  %711 = vmatpush.msra.mxu0 0.0
  %712 = vmatpush.msra.mxu0 0.0
  %713 = vmatpush.msra.mxu0 0.0
  %714 = vmatpush.msra.mxu0 0.0
  %715 = vmatpush.msra.mxu0 0.0
  %716 = vmatpush.msra.mxu0 0.0
  %717 = vmatpush.msra.mxu0 0.0
  %718 = vmatpush.msra.mxu0 0.0
  %719 = vmatpush.msra.mxu0 0.0
  %720 = vmatpush.msra.mxu0 %v697
  %721 = vmatpush.msra.mxu0 %v695
  %722 = vmatpush.msra.mxu0 %v693
  %723 = vmatpush.msra.mxu0 %v691
  %724 = vmatmul.f32.gmra.mxu0 %v703
  %v725 = vpop.f32.mrf.mxu0
  %v726 = vadd.f32 %v676, %v725
  %727 = vmatmul.f32.gmra.mxu0 %v706
  %v728 = vpop.f32.mrf.mxu0
  %v729 = vadd.f32 %v676, %v728
  %730 = vdwg.mxu0
  %v731 = vmax.f32 %v726, 0.0
  %v732 = vmax.f32 %v729, 0.0
  %733 = vrot.lane.b32.xlu0 %v676, 64
  %v734 = vpop.permute.xlu0 %733
  %v737 = vsel %vm50, %v731, 0
  %v740 = vsel %vm50, %v732, 0
  %742 = vmatpush.msra.mxu0 0.0
  %743 = vmatpush.msra.mxu0 0.0
  %744 = vmatpush.msra.mxu0 0.0
  %745 = vmatpush.msra.mxu0 0.0
  %746 = vmatpush.msra.mxu0 0.0
  %747 = vmatpush.msra.mxu0 0.0
  %748 = vmatpush.msra.mxu0 0.0
  %749 = vmatpush.msra.mxu0 0.0
  %750 = vmatpush.msra.mxu0 %v265
  %751 = vmatpush.msra.mxu0 %v264
  %752 = vmatpush.msra.mxu0 %v263
  %753 = vmatpush.msra.mxu0 %v262
  %754 = vmatpush.msra.mxu0 %v261
  %755 = vmatpush.msra.mxu0 %v260
  %756 = vmatpush.msra.mxu0 %v259
  %757 = vmatpush.msra.mxu0 %v258
  %758 = vmatmul.f32.gmra.mxu0 %v737
  %v759 = vpop.f32.mrf.mxu0
  %v760 = vadd.f32 %v734, %v759
  %761 = vmatmul.f32.gmra.mxu0 %v740
  %v762 = vpop.f32.mrf.mxu0
  %v763 = vadd.f32 %v734, %v762
  %764 = vdwg.mxu0
  %v765 = vadd.f32 %v684, %v760
  %v766 = vadd.f32 %v685, %v763
  %v767 = vsel %vm106, %v765, 0.0
  %768 = vadd.xlane.f32.xlu0 %v767
  %v769 = vpop.xlane.xlu0 %768
  %v770 = vsel %vm106, %v766, 0.0
  %771 = vadd.xlane.f32.xlu0 %v770
  %v772 = vpop.xlane.xlu0 %771
  %v773 = vmul.f32 %v769, %v637
  %v774 = vmul.f32 %v772, %v637
  %v775 = vsub.f32 %v765, %v773
  %v776 = vsub.f32 %v766, %v774
  %v777 = vmul.f32 %v775, %v775
  %v778 = vmul.f32 %v776, %v776
  %v779 = vsel %vm106, %v777, 0.0
  %780 = vadd.xlane.f32.xlu0 %v779
  %v781 = vpop.xlane.xlu0 %780
  %v782 = vsel %vm106, %v778, 0.0
  %783 = vadd.xlane.f32.xlu0 %v782
  %v784 = vpop.xlane.xlu0 %783
  %v785 = vmul.f32 %v781, %v637
  %v786 = vmul.f32 %v784, %v637
  %v787 = vadd.f32 %v785, 1e-05
  %v788 = vadd.f32 %v786, 1e-05
  %v789 = vrsqrt.pop %v787
  %v790 = vmul.f32 %v789, %v787
  %v791 = vmul.f32 %v790, %v789
  %v792 = vmul.f32 0.5, %v791
  %v793 = vsub.f32 1.5, %v792
  %v794 = vmul.f32 %v789, %v793
  %vm795 = vweird.f32 %v787
  %vm796 = vweird.f32 %v789
  %vm797 = vmor %vm795, %vm796
  %v798 = vsel %vm797, %v789, %v794
  %v799 = vrsqrt.pop %v788
  %v800 = vmul.f32 %v799, %v788
  %v801 = vmul.f32 %v800, %v799
  %v802 = vmul.f32 0.5, %v801
  %v803 = vsub.f32 1.5, %v802
  %v804 = vmul.f32 %v799, %v803
  %vm805 = vweird.f32 %v788
  %vm806 = vweird.f32 %v799
  %vm807 = vmor %vm805, %vm806
  %v808 = vsel %vm807, %v799, %v804
  %v809 = vmul.f32 %v775, %v798
  %v810 = vmul.f32 %v776, %v808
  %812 = vrot.lane.b32.xlu0 %v683, 96
  %v813 = vpop.permute.xlu0 %812
  %v815 = vmul.f32 %v809, %v813
  %v816 = vmul.f32 %v810, %v813
  %817 = vrot.lane.b32.xlu0 %v683, 64
  %v818 = vpop.permute.xlu0 %817
  %v820 = vadd.f32 %v815, %v818
  %v821 = vadd.f32 %v816, %v818
  %v822 = vld [vmem:[%s3 + $0x78] sm:$0xff]
  %v823 = vld [vmem:[%s3 + $0x80] sm:$0xff]
  %v824 = vld [vmem:[%s3 + $0x88] sm:$0xff]
  %v825 = vld [vmem:[%s3 + $0x90] sm:$0xff]
  %v826 = vld [vmem:[%s3 + $0x98] sm:$0xff]
  %v827 = vld [vmem:[%s3 + $0xa0] sm:$0xff]
  %v828 = vld [vmem:[%s3 + $0xa8] sm:$0xff]
  %v829 = vld [vmem:[%s3 + $0xb0] sm:$0xff]
  %v830 = vld [vmem:[%s3 + $0xb8] sm:$0xff]
  %v831 = vld [vmem:[%s3 + $0xc0] sm:$0xff]
  %v832 = vld [vmem:[%s3 + $0xc8] sm:$0xff]
  %v833 = vld [vmem:[%s3 + $0xd0] sm:$0xff]
  %v834 = vld [vmem:[%s3 + $0xd8] sm:$0x1]
  %v835 = vld [vmem:[%s3 + $0xe0] sm:$0x1]
  %v836 = vld [vmem:[%s3 + $0xe8] sm:$0x1]
  %837 = vmatpush.msra.mxu0 0.0
  %838 = vmatpush.msra.mxu0 0.0
  %839 = vmatpush.msra.mxu0 0.0
  %840 = vmatpush.msra.mxu0 0.0
  %841 = vmatpush.msra.mxu0 0.0
  %842 = vmatpush.msra.mxu0 0.0
  %843 = vmatpush.msra.mxu0 0.0
  %844 = vmatpush.msra.mxu0 0.0
  %845 = vmatpush.msra.mxu0 0.0
  %846 = vmatpush.msra.mxu0 0.0
  %847 = vmatpush.msra.mxu0 0.0
  %848 = vmatpush.msra.mxu0 0.0
  %849 = vmatpush.msra.mxu0 0.0
  %850 = vmatpush.msra.mxu0 0.0
  %851 = vmatpush.msra.mxu0 %v821
  %852 = vmatpush.msra.mxu0 %v820
  %853 = vmatmul.f32.gmra.mxu0 %v271
  %v854 = vpop.f32.mrf.mxu0
  %v855 = vadd.f32 0.0, %v854
  %856 = vmatmul.f32.gmra.mxu0 %v274
  %v857 = vpop.f32.mrf.mxu0
  %v858 = vadd.f32 0.0, %v857
  %859 = vmatmul.f32.gmra.mxu0 %v276
  %v860 = vpop.f32.mrf.mxu0
  %v861 = vadd.f32 0.0, %v860
  %862 = vmatmul.f32.gmra.mxu0 %v278
  %v863 = vpop.f32.mrf.mxu0
  %v864 = vadd.f32 0.0, %v863
  %865 = vdwg.mxu0
  %v866 = vperm.slane %v834, 0
  %v868 = vsel %vm106, %v855, 0
  %v871 = vsel %vm106, %v858, 0
  %v874 = vsel %vm106, %v861, 0
  %v877 = vsel %vm106, %v864, 0
  %879 = vmatpush.msra.mxu0 0.0
  %880 = vmatpush.msra.mxu0 0.0
  %881 = vmatpush.msra.mxu0 0.0
  %882 = vmatpush.msra.mxu0 0.0
  %883 = vmatpush.msra.mxu0 0.0
  %884 = vmatpush.msra.mxu0 0.0
  %885 = vmatpush.msra.mxu0 0.0
  %886 = vmatpush.msra.mxu0 0.0
  %887 = vmatpush.msra.mxu0 0.0
  %888 = vmatpush.msra.mxu0 0.0
  %889 = vmatpush.msra.mxu0 0.0
  %890 = vmatpush.msra.mxu0 0.0
  %891 = vmatpush.msra.mxu0 %v825
  %892 = vmatpush.msra.mxu0 %v824
  %893 = vmatpush.msra.mxu0 %v823
  %894 = vmatpush.msra.mxu0 %v822
  %895 = vmatmul.f32.gmra.mxu0 %v868
  %v896 = vpop.f32.mrf.mxu0
  %v897 = vadd.f32 %v866, %v896
  %898 = vmatmul.f32.gmra.mxu0 %v871
  %v899 = vpop.f32.mrf.mxu0
  %v900 = vadd.f32 %v866, %v899
  %901 = vmatmul.f32.gmra.mxu0 %v874
  %v902 = vpop.f32.mrf.mxu0
  %v903 = vadd.f32 %v866, %v902
  %904 = vmatmul.f32.gmra.mxu0 %v877
  %v905 = vpop.f32.mrf.mxu0
  %v906 = vadd.f32 %v866, %v905
  %907 = vdwg.mxu0
  %v908 = vmul.f32 %v897, %v352
  %v909 = vmul.f32 %v900, %v354
  %v910 = vmul.f32 %v903, %v356
  %v911 = vmul.f32 %v906, %v358
  %916 = vrot.lane.b32.xlu0 %v897, 96
  %v917 = vpop.permute.xlu0 %916
  %918 = vrot.lane.b32.xlu0 %v900, 96
  %v919 = vpop.permute.xlu0 %918
  %920 = vrot.lane.b32.xlu0 %v903, 96
  %v921 = vpop.permute.xlu0 %920
  %922 = vrot.lane.b32.xlu0 %v906, 96
  %v923 = vpop.permute.xlu0 %922
  %v925 = vsel %vm106, %v908, 0
  %v928 = vsel %vm106, %v909, 0
  %v931 = vsel %vm106, %v910, 0
  %v934 = vsel %vm106, %v911, 0
  %v936 = vsel %vm106, %v917, 0
  %v938 = vsel %vm106, %v919, 0
  %v940 = vsel %vm106, %v921, 0
  %v942 = vsel %vm106, %v923, 0
  %944 = vmatpush.xpose.msra.mxu0 0.0
  %945 = vmatpush.xpose.msra.mxu0 0.0
  %946 = vmatpush.xpose.msra.mxu0 0.0
  %947 = vmatpush.xpose.msra.mxu0 0.0
  %948 = vmatpush.xpose.msra.mxu0 0.0
  %949 = vmatpush.xpose.msra.mxu0 0.0
  %950 = vmatpush.xpose.msra.mxu0 0.0
  %951 = vmatpush.xpose.msra.mxu0 0.0
  %952 = vmatpush.xpose.msra.mxu0 0.0
  %953 = vmatpush.xpose.msra.mxu0 0.0
  %954 = vmatpush.xpose.msra.mxu0 0.0
  %955 = vmatpush.xpose.msra.mxu0 0.0
  %956 = vmatpush.xpose.msra.mxu0 %v942
  %957 = vmatpush.xpose.msra.mxu0 %v940
  %958 = vmatpush.xpose.msra.mxu0 %v938
  %959 = vmatpush.xpose.msra.mxu0 %v936
  %960 = vmatmul.f32.gmra.mxu0 %v925
  %v961 = vpop.f32.mrf.mxu0
  %v962 = vadd.f32 %v380, %v961
  %963 = vmatmul.f32.gmra.mxu0 %v928
  %v964 = vpop.f32.mrf.mxu0
  %v965 = vadd.f32 %v382, %v964
  %966 = vmatmul.f32.gmra.mxu0 %v931
  %v967 = vpop.f32.mrf.mxu0
  %v968 = vadd.f32 %v384, %v967
  %969 = vmatmul.f32.gmra.mxu0 %v934
  %v970 = vpop.f32.mrf.mxu0
  %v971 = vadd.f32 %v386, %v970
  %972 = vdwg.mxu0
  %v973 = vsel %vm106, %v962, -inf
  %974 = vmax.xlane.f32.xlu0 %v973
  %v975 = vpop.xlane.xlu0 %974
  %v976 = vsel %vm106, %v965, -inf
  %977 = vmax.xlane.f32.xlu0 %v976
  %v978 = vpop.xlane.xlu0 %977
  %v979 = vsel %vm106, %v968, -inf
  %980 = vmax.xlane.f32.xlu0 %v979
  %v981 = vpop.xlane.xlu0 %980
  %v982 = vsel %vm106, %v971, -inf
  %983 = vmax.xlane.f32.xlu0 %v982
  %v984 = vpop.xlane.xlu0 %983
  %v985 = vsub.f32 %v962, %v975
  %v986 = vsub.f32 %v965, %v978
  %v987 = vsub.f32 %v968, %v981
  %v988 = vsub.f32 %v971, %v984
  %v989 = vmul.f32 %v985, 1.442695
  %v990 = vpow.pop %v989
  %v991 = vmul.f32 %v986, 1.442695
  %v992 = vpow.pop %v991
  %v993 = vmul.f32 %v987, 1.442695
  %v994 = vpow.pop %v993
  %v995 = vmul.f32 %v988, 1.442695
  %v996 = vpow.pop %v995
  %v997 = vsel %vm106, %v990, 0.0
  %998 = vadd.xlane.f32.xlu0 %v997
  %v999 = vpop.xlane.xlu0 %998
  %v1000 = vsel %vm106, %v992, 0.0
  %1001 = vadd.xlane.f32.xlu0 %v1000
  %v1002 = vpop.xlane.xlu0 %1001
  %v1003 = vsel %vm106, %v994, 0.0
  %1004 = vadd.xlane.f32.xlu0 %v1003
  %v1005 = vpop.xlane.xlu0 %1004
  %v1006 = vsel %vm106, %v996, 0.0
  %1007 = vadd.xlane.f32.xlu0 %v1006
  %v1008 = vpop.xlane.xlu0 %1007
  %v1009 = vrcp.pop %v999
  %v1010 = vrcp.pop %v1002
  %v1011 = vrcp.pop %v1005
  %v1012 = vrcp.pop %v1008
  %v1013 = vmul.f32 %v990, %v1009
  %v1014 = vmul.f32 %v992, %v1010
  %v1015 = vmul.f32 %v994, %v1011
  %v1016 = vmul.f32 %v996, %v1012
  %1017 = vrot.lane.b32.xlu0 %v897, 64
  %v1018 = vpop.permute.xlu0 %1017
  %1019 = vrot.lane.b32.xlu0 %v900, 64
  %v1020 = vpop.permute.xlu0 %1019
  %1021 = vrot.lane.b32.xlu0 %v903, 64
  %v1022 = vpop.permute.xlu0 %1021
  %1023 = vrot.lane.b32.xlu0 %v906, 64
  %v1024 = vpop.permute.xlu0 %1023
  %v1030 = vsel %vm106, %v1013, 0
  %v1033 = vsel %vm106, %v1014, 0
  %v1036 = vsel %vm106, %v1015, 0
  %v1039 = vsel %vm106, %v1016, 0
  %1041 = vmatpush.msra.mxu0 0.0
  %1042 = vmatpush.msra.mxu0 0.0
  %1043 = vmatpush.msra.mxu0 0.0
  %1044 = vmatpush.msra.mxu0 0.0
  %1045 = vmatpush.msra.mxu0 0.0
  %1046 = vmatpush.msra.mxu0 0.0
  %1047 = vmatpush.msra.mxu0 0.0
  %1048 = vmatpush.msra.mxu0 0.0
  %1049 = vmatpush.msra.mxu0 0.0
  %1050 = vmatpush.msra.mxu0 0.0
  %1051 = vmatpush.msra.mxu0 0.0
  %1052 = vmatpush.msra.mxu0 0.0
  %1053 = vmatpush.msra.mxu0 %v1024
  %1054 = vmatpush.msra.mxu0 %v1022
  %1055 = vmatpush.msra.mxu0 %v1020
  %1056 = vmatpush.msra.mxu0 %v1018
  %1057 = vmatmul.f32.gmra.mxu0 %v1030
  %v1058 = vpop.f32.mrf.mxu0
  %v1059 = vadd.f32 0.0, %v1058
  %1060 = vmatmul.f32.gmra.mxu0 %v1033
  %v1061 = vpop.f32.mrf.mxu0
  %v1062 = vadd.f32 0.0, %v1061
  %1063 = vmatmul.f32.gmra.mxu0 %v1036
  %v1064 = vpop.f32.mrf.mxu0
  %v1065 = vadd.f32 0.0, %v1064
  %1066 = vmatmul.f32.gmra.mxu0 %v1039
  %v1067 = vpop.f32.mrf.mxu0
  %v1068 = vadd.f32 0.0, %v1067
  %1069 = vdwg.mxu0
  %v1070 = vmul.f32 %v1059, %v352
  %v1071 = vmul.f32 %v1062, %v354
  %v1072 = vmul.f32 %v1065, %v356
  %v1073 = vmul.f32 %v1068, %v358
  %1074 = vmatpush.msra.mxu0 0.0
  %1075 = vmatpush.msra.mxu0 0.0
  %1076 = vmatpush.msra.mxu0 0.0
  %1077 = vmatpush.msra.mxu0 0.0
  %1078 = vmatpush.msra.mxu0 0.0
  %1079 = vmatpush.msra.mxu0 0.0
  %1080 = vmatpush.msra.mxu0 0.0
  %1081 = vmatpush.msra.mxu0 0.0
  %1082 = vmatpush.msra.mxu0 0.0
  %1083 = vmatpush.msra.mxu0 0.0
  %1084 = vmatpush.msra.mxu0 0.0
  %1085 = vmatpush.msra.mxu0 0.0
  %1086 = vmatpush.msra.mxu0 %v1073
  %1087 = vmatpush.msra.mxu0 %v1072
  %1088 = vmatpush.msra.mxu0 %v1071
  %1089 = vmatpush.msra.mxu0 %v1070
  %1090 = vmatmul.f32.gmra.mxu0 %v547
  %v1091 = vpop.f32.mrf.mxu0
  %v1092 = vadd.f32 0.0, %v1091
  %1093 = vmatmul.f32.gmra.mxu0 %v549
  %v1094 = vpop.f32.mrf.mxu0
  %v1095 = vadd.f32 0.0, %v1094
  %1096 = vdwg.mxu0
  %1101 = vrot.lane.b32.xlu0 %v822, 32
  %v1102 = vpop.permute.xlu0 %1101
  %1103 = vrot.lane.b32.xlu0 %v823, 32
  %v1104 = vpop.permute.xlu0 %1103
  %1105 = vrot.lane.b32.xlu0 %v824, 32
  %v1106 = vpop.permute.xlu0 %1105
  %1107 = vrot.lane.b32.xlu0 %v825, 32
  %v1108 = vpop.permute.xlu0 %1107
  %1114 = vrot.lane.b32.xlu0 %v866, 32
  %v1115 = vpop.permute.xlu0 %1114
  %v1118 = vsel %vm106, %v1092, 0
  %v1121 = vsel %vm106, %v1095, 0
  %1123 = vmatpush.msra.mxu0 0.0
  %1124 = vmatpush.msra.mxu0 0.0
  %1125 = vmatpush.msra.mxu0 0.0
  %1126 = vmatpush.msra.mxu0 0.0
  %1127 = vmatpush.msra.mxu0 0.0
  %1128 = vmatpush.msra.mxu0 0.0
  %1129 = vmatpush.msra.mxu0 0.0
  %1130 = vmatpush.msra.mxu0 0.0
  %1131 = vmatpush.msra.mxu0 0.0
  %1132 = vmatpush.msra.mxu0 0.0
  %1133 = vmatpush.msra.mxu0 0.0
  %1134 = vmatpush.msra.mxu0 0.0
  %1135 = vmatpush.msra.mxu0 %v1108
  %1136 = vmatpush.msra.mxu0 %v1106
  %1137 = vmatpush.msra.mxu0 %v1104
  %1138 = vmatpush.msra.mxu0 %v1102
  %1139 = vmatmul.f32.gmra.mxu0 %v1118
  %v1140 = vpop.f32.mrf.mxu0
  %v1141 = vadd.f32 %v1115, %v1140
  %1142 = vmatmul.f32.gmra.mxu0 %v1121
  %v1143 = vpop.f32.mrf.mxu0
  %v1144 = vadd.f32 %v1115, %v1143
  %1145 = vdwg.mxu0
  %v1146 = vadd.f32 %v820, %v1141
  %v1147 = vadd.f32 %v821, %v1144
  %v1148 = vsel %vm106, %v1146, 0.0
  %1149 = vadd.xlane.f32.xlu0 %v1148
  %v1150 = vpop.xlane.xlu0 %1149
  %v1151 = vsel %vm106, %v1147, 0.0
  %1152 = vadd.xlane.f32.xlu0 %v1151
  %v1153 = vpop.xlane.xlu0 %1152
  %v1154 = vmul.f32 %v1150, %v637
  %v1155 = vmul.f32 %v1153, %v637
  %v1156 = vsub.f32 %v1146, %v1154
  %v1157 = vsub.f32 %v1147, %v1155
  %v1158 = vmul.f32 %v1156, %v1156
  %v1159 = vmul.f32 %v1157, %v1157
  %v1160 = vsel %vm106, %v1158, 0.0
  %1161 = vadd.xlane.f32.xlu0 %v1160
  %v1162 = vpop.xlane.xlu0 %1161
  %v1163 = vsel %vm106, %v1159, 0.0
  %1164 = vadd.xlane.f32.xlu0 %v1163
  %v1165 = vpop.xlane.xlu0 %1164
  %v1166 = vmul.f32 %v1162, %v637
  %v1167 = vmul.f32 %v1165, %v637
  %v1168 = vadd.f32 %v1166, 1e-05
  %v1169 = vadd.f32 %v1167, 1e-05
  %v1170 = vrsqrt.pop %v1168
  %v1171 = vmul.f32 %v1170, %v1168
  %v1172 = vmul.f32 %v1171, %v1170
  %v1173 = vmul.f32 0.5, %v1172
  %v1174 = vsub.f32 1.5, %v1173
  %v1175 = vmul.f32 %v1170, %v1174
  %vm1176 = vweird.f32 %v1168
  %vm1177 = vweird.f32 %v1170
  %vm1178 = vmor %vm1176, %vm1177
  %v1179 = vsel %vm1178, %v1170, %v1175
  %v1180 = vrsqrt.pop %v1169
  %v1181 = vmul.f32 %v1180, %v1169
  %v1182 = vmul.f32 %v1181, %v1180
  %v1183 = vmul.f32 0.5, %v1182
  %v1184 = vsub.f32 1.5, %v1183
  %v1185 = vmul.f32 %v1180, %v1184
  %vm1186 = vweird.f32 %v1169
  %vm1187 = vweird.f32 %v1180
  %vm1188 = vmor %vm1186, %vm1187
  %v1189 = vsel %vm1188, %v1180, %v1185
  %v1190 = vmul.f32 %v1156, %v1179
  %v1191 = vmul.f32 %v1157, %v1189
  %v1192 = vperm.slane %v835, 0
  %1194 = vrot.lane.b32.xlu0 %v1192, 32
  %v1195 = vpop.permute.xlu0 %1194
  %v1197 = vmul.f32 %v1190, %v1195
  %v1198 = vmul.f32 %v1191, %v1195
  %v1199 = vperm.slane %v836, 0
  %v1200 = vadd.f32 %v1197, %v1199
  %v1201 = vadd.f32 %v1198, %v1199
  %1206 = vrot.lane.b32.xlu0 %v826, 96
  %v1207 = vpop.permute.xlu0 %1206
  %1208 = vrot.lane.b32.xlu0 %v827, 96
  %v1209 = vpop.permute.xlu0 %1208
  %1210 = vrot.lane.b32.xlu0 %v828, 96
  %v1211 = vpop.permute.xlu0 %1210
  %1212 = vrot.lane.b32.xlu0 %v829, 96
  %v1213 = vpop.permute.xlu0 %1212
  %v1219 = vsel %vm106, %v1200, 0
  %v1222 = vsel %vm106, %v1201, 0
  %1224 = vmatpush.msra.mxu0 0.0
  %1225 = vmatpush.msra.mxu0 0.0
  %1226 = vmatpush.msra.mxu0 0.0
  %1227 = vmatpush.msra.mxu0 0.0
  %1228 = vmatpush.msra.mxu0 0.0
  %1229 = vmatpush.msra.mxu0 0.0
  %1230 = vmatpush.msra.mxu0 0.0
  %1231 = vmatpush.msra.mxu0 0.0
  %1232 = vmatpush.msra.mxu0 0.0
  %1233 = vmatpush.msra.mxu0 0.0
  %1234 = vmatpush.msra.mxu0 0.0
  %1235 = vmatpush.msra.mxu0 0.0
  %1236 = vmatpush.msra.mxu0 %v1213
  %1237 = vmatpush.msra.mxu0 %v1211
  %1238 = vmatpush.msra.mxu0 %v1209
  %1239 = vmatpush.msra.mxu0 %v1207
  %1240 = vmatmul.f32.gmra.mxu0 %v1219
  %v1241 = vpop.f32.mrf.mxu0
  %v1242 = vadd.f32 %v1192, %v1241
  %1243 = vmatmul.f32.gmra.mxu0 %v1222
  %v1244 = vpop.f32.mrf.mxu0
  %v1245 = vadd.f32 %v1192, %v1244
  %1246 = vdwg.mxu0
  %v1247 = vmax.f32 %v1242, 0.0
  %v1248 = vmax.f32 %v1245, 0.0
  %1249 = vrot.lane.b32.xlu0 %v1192, 64
  %v1250 = vpop.permute.xlu0 %1249
  %v1253 = vsel %vm50, %v1247, 0
  %v1256 = vsel %vm50, %v1248, 0
  %1258 = vmatpush.msra.mxu0 0.0
  %1259 = vmatpush.msra.mxu0 0.0
  %1260 = vmatpush.msra.mxu0 0.0
  %1261 = vmatpush.msra.mxu0 0.0
  %1262 = vmatpush.msra.mxu0 0.0
  %1263 = vmatpush.msra.mxu0 0.0
  %1264 = vmatpush.msra.mxu0 0.0
  %1265 = vmatpush.msra.mxu0 0.0
  %1266 = vmatpush.msra.mxu0 %v833
  %1267 = vmatpush.msra.mxu0 %v832
  %1268 = vmatpush.msra.mxu0 %v831
  %1269 = vmatpush.msra.mxu0 %v830
  %1270 = vmatpush.msra.mxu0 %v829
  %1271 = vmatpush.msra.mxu0 %v828
  %1272 = vmatpush.msra.mxu0 %v827
  %1273 = vmatpush.msra.mxu0 %v826
  %1274 = vmatmul.f32.gmra.mxu0 %v1253
  %v1275 = vpop.f32.mrf.mxu0
  %v1276 = vadd.f32 %v1250, %v1275
  %1277 = vmatmul.f32.gmra.mxu0 %v1256
  %v1278 = vpop.f32.mrf.mxu0
  %v1279 = vadd.f32 %v1250, %v1278
  %1280 = vdwg.mxu0
  %v1281 = vadd.f32 %v1200, %v1276
  %v1282 = vadd.f32 %v1201, %v1279
  %v1283 = vsel %vm106, %v1281, 0.0
  %1284 = vadd.xlane.f32.xlu0 %v1283
  %v1285 = vpop.xlane.xlu0 %1284
  %v1286 = vsel %vm106, %v1282, 0.0
  %1287 = vadd.xlane.f32.xlu0 %v1286
  %v1288 = vpop.xlane.xlu0 %1287
  %v1289 = vmul.f32 %v1285, %v637
  %v1290 = vmul.f32 %v1288, %v637
  %v1291 = vsub.f32 %v1281, %v1289
  %v1292 = vsub.f32 %v1282, %v1290
  %v1293 = vmul.f32 %v1291, %v1291
  %v1294 = vmul.f32 %v1292, %v1292
  %v1295 = vsel %vm106, %v1293, 0.0
  %1296 = vadd.xlane.f32.xlu0 %v1295
  %v1297 = vpop.xlane.xlu0 %1296
  %v1298 = vsel %vm106, %v1294, 0.0
  %1299 = vadd.xlane.f32.xlu0 %v1298
  %v1300 = vpop.xlane.xlu0 %1299
  %v1301 = vmul.f32 %v1297, %v637
  %v1302 = vmul.f32 %v1300, %v637
  %v1303 = vadd.f32 %v1301, 1e-05
  %v1304 = vadd.f32 %v1302, 1e-05
  %v1305 = vrsqrt.pop %v1303
  %v1306 = vmul.f32 %v1305, %v1303
  %v1307 = vmul.f32 %v1306, %v1305
  %v1308 = vmul.f32 0.5, %v1307
  %v1309 = vsub.f32 1.5, %v1308
  %v1310 = vmul.f32 %v1305, %v1309
  %vm1311 = vweird.f32 %v1303
  %vm1312 = vweird.f32 %v1305
  %vm1313 = vmor %vm1311, %vm1312
  %v1314 = vsel %vm1313, %v1305, %v1310
  %v1315 = vrsqrt.pop %v1304
  %v1316 = vmul.f32 %v1315, %v1304
  %v1317 = vmul.f32 %v1316, %v1315
  %v1318 = vmul.f32 0.5, %v1317
  %v1319 = vsub.f32 1.5, %v1318
  %v1320 = vmul.f32 %v1315, %v1319
  %vm1321 = vweird.f32 %v1304
  %vm1322 = vweird.f32 %v1315
  %vm1323 = vmor %vm1321, %vm1322
  %v1324 = vsel %vm1323, %v1315, %v1320
  %v1325 = vmul.f32 %v1291, %v1314
  %v1326 = vmul.f32 %v1292, %v1324
  %1328 = vrot.lane.b32.xlu0 %v1199, 96
  %v1329 = vpop.permute.xlu0 %1328
  %v1331 = vmul.f32 %v1325, %v1329
  %v1332 = vmul.f32 %v1326, %v1329
  %1333 = vrot.lane.b32.xlu0 %v1199, 64
  %v1334 = vpop.permute.xlu0 %1333
  %v1336 = vadd.f32 %v1331, %v1334
  %v1337 = vadd.f32 %v1332, %v1334
  %v1338 = vld [vmem:[%s4] sm:$0xff]
  %v1339 = vld [vmem:[%s4 + $0x8] sm:$0xff]
  %v1340 = vld [vmem:[%s4 + $0x10] sm:$0xff]
  %v1341 = vld [vmem:[%s4 + $0x18] sm:$0xff]
  %v1342 = vld [vmem:[%s4 + $0x20] sm:$0x1]
  %v1343 = vperm.slane %v1342, 0
  %v1345 = vsel %vm106, %v1336, 0
  %v1348 = vsel %vm106, %v1337, 0
  %1350 = vmatpush.msra.mxu0 0.0
  %1351 = vmatpush.msra.mxu0 0.0
  %1352 = vmatpush.msra.mxu0 0.0
  %1353 = vmatpush.msra.mxu0 0.0
  %1354 = vmatpush.msra.mxu0 0.0
  %1355 = vmatpush.msra.mxu0 0.0
  %1356 = vmatpush.msra.mxu0 0.0
  %1357 = vmatpush.msra.mxu0 0.0
  %1358 = vmatpush.msra.mxu0 0.0
  %1359 = vmatpush.msra.mxu0 0.0
  %1360 = vmatpush.msra.mxu0 0.0
  %1361 = vmatpush.msra.mxu0 0.0
  %1362 = vmatpush.msra.mxu0 %v1341
  %1363 = vmatpush.msra.mxu0 %v1340
  %1364 = vmatpush.msra.mxu0 %v1339
  %1365 = vmatpush.msra.mxu0 %v1338
  %1366 = vmatmul.f32.gmra.mxu0 %v1345
  %v1367 = vpop.f32.mrf.mxu0
  %v1368 = vadd.f32 %v1343, %v1367
  %1369 = vmatmul.f32.gmra.mxu0 %v1348
  %v1370 = vpop.f32.mrf.mxu0
  %v1371 = vadd.f32 %v1343, %v1370
  %1372 = vdwg.mxu0
  %1373 = vst [vmem:[%s5] sm:$0xff] %v1368
  %1374 = vst [vmem:[%s5 + $0x8] sm:$0xff] %v1371
  // Predicated region
  $region22: #{ner_classifier_forward.1} parent=0 // pred_check
    _
  $region23: #{ner_classifier_forward.1} parent=0 // pred_check_branch
    %1376 = sbr.rel (0) target = $region25
  $region24: #{ner_classifier_forward.1} parent=0 // pred_region
    _
  $region25: #{ner_classifier_forward.1} parent=0 // pred_fallthru
    _
  // Predicated region
  $region26: #{ner_classifier_forward.1} parent=0 // pred_check
    _
  $region27: #{ner_classifier_forward.1} parent=0 // pred_check_branch
    %1378 = sbr.rel (0) target = $region29
  $region28: #{ner_classifier_forward.1} parent=0 // pred_region
    _
  $region29: #{ner_classifier_forward.1} parent=0 // pred_fallthru
    _

</llo_original>
